<compile_context>
chip_gen: v6e
topology: v6e:2x2x1
jax: 0.10.0
libtpu: 0.0.40
codegen_flags: <defaults>
</compile_context>

<pallas_src>
import functools
import math
from typing import Optional

import jax
import jax.numpy as jnp
from jax.experimental import pallas as pl
from jax.experimental.pallas import tpu as pltpu


def _make_divisible(v: float, divisor: int, min_value: Optional[int] = None) -> int:
    if min_value is None:
        min_value = divisor
    new_v = max(min_value, int(v + divisor / 2) // divisor * divisor)
    if new_v < 0.9 * v:
        new_v += divisor
    return new_v


# --------------------------------------------------------------------------
# VMEM sizing helpers
# --------------------------------------------------------------------------
def _vmem_capacity_bytes() -> int:
    try:
        cap = int(pltpu.get_tpu_info().vmem_capacity_bytes)
        if cap > 0:
            return cap
    except Exception:
        pass
    return 64 << 20  # conservative fallback: v7x-sized per-core VMEM


def _ru(x: int, m: int) -> int:
    return ((x + m - 1) // m) * m


def _bytes_f32(rows: int, cols: int) -> int:
    # f32 tile padded to the (8, 128) layout.
    return _ru(rows, 8) * _ru(cols, 128) * 4


def _divisor_tiles(total: int, unit: int):
    tiles = {total}
    for d in range(unit, total + 1, unit):
        if total % d == 0:
            tiles.add(d)
    return sorted(tiles)


def _vmem_limit_bytes(block_bytes: int, capacity: int):
    need = int(block_bytes) + (4 << 20)      # headroom for weights / Mosaic scratch
    if need <= (14 << 20):
        return None                          # default scoped limit (>=16 MiB) is fine
    return min(max(need, 20 << 20), int(capacity * 0.85))


def _pick_pool_tiles(c: int, h: int, w: int, budget: int):
    hw = h * w
    c_tiles = _divisor_tiles(c, 8)
    hw_tiles = _divisor_tiles(hw, 128)

    def cost(ct, hwt):
        return (2 * _bytes_f32(ct, hwt)           # x block, double-buffered
                + 2 * _bytes_f32(hwt, h + w)      # packed selector block
                + 2 * _bytes_f32(ct, h + w)       # output block
                + _bytes_f32(ct, h + w))          # accumulator scratch

    best, best_key = None, None
    for ct in c_tiles:
        for hwt in hw_tiles:
            cst = cost(ct, hwt)
            key = (ct * hwt, hwt)
            if cst <= budget and (best_key is None or key > best_key):
                best, best_key = (ct, hwt), key
    if best is None:
        best = (min(c_tiles), min(hw_tiles))
    return best[0], best[1], cost(*best)


def _pick_gate_tile(c: int, h: int, w: int, budget: int):
    hw = h * w
    c_tiles = _divisor_tiles(c, 8)
    sel = _bytes_f32(h, hw) + _bytes_f32(w, hw)   # pt + qt selector constants

    def cost(ct):
        blk = _bytes_f32(ct, hw)
        return (2 * blk                            # x block, double-buffered
                + 2 * blk                          # out block, double-buffered
                + 2 * _bytes_f32(ct, h + w)        # packed gates block
                + 2 * sel                          # selectors (assume 2 copies)
                + 2 * blk)                         # live matmul intermediates

    fitting = [ct for ct in c_tiles if cost(ct) <= budget]
    ct = max(fitting) if fitting else min(c_tiles)
    return ct, cost(ct)


# --------------------------------------------------------------------------
# Stage 1: coordinate pooling (hw is a reduction grid axis)
# --------------------------------------------------------------------------
def _ca_pool_kernel(x_ref, pq_ref, y_ref, acc_ref):
    k = pl.program_id(2)

    @pl.when(k == 0)
    def _init():
        acc_ref[...] = jnp.zeros_like(acc_ref)

    # (c_t, hw_t) @ (hw_t, h+w): mean-pool over w (first h cols) and over h
    # (last w cols) on the MXU — no cross-lane reductions needed.
    acc_ref[...] += jnp.dot(x_ref[0], pq_ref[...],
                            preferred_element_type=jnp.float32)

    @pl.when(k == pl.num_programs(2) - 1)
    def _finalize():
        y_ref[0] = acc_ref[...]


# --------------------------------------------------------------------------
# Stage 2: conv1 (+folded BN) + hardswish + conv_h / conv_w + sigmoid
# --------------------------------------------------------------------------
def _ca_mlp_kernel(y_ref, w1_ref, b1_ref, wh_ref, bh_ref, ww_ref, bw_ref,
                   a_ref, *, h):
    y0 = y_ref[0]                                                  # (c, h+w)
    z = jnp.dot(w1_ref[...], y0, preferred_element_type=jnp.float32) + b1_ref[...]
    z = z * jnp.clip(z + 3.0, 0.0, 6.0) * (1.0 / 6.0)              # hardswish
    ah = jax.nn.sigmoid(
        jnp.dot(wh_ref[...], z, preferred_element_type=jnp.float32) + bh_ref[...])
    aw = jax.nn.sigmoid(
        jnp.dot(ww_ref[...], z, preferred_element_type=jnp.float32) + bw_ref[...])
    # Pack the two gates into one lane-dense output (no lane slicing: select
    # by column index instead — the duplicated tiny matmul columns are free).
    col = jax.lax.broadcasted_iota(jnp.int32, ah.shape, 1)
    a_ref[0] = jnp.where(col < h, ah, aw)


# --------------------------------------------------------------------------
# Stage 3: gating — out = x * a_h * a_w (HBM-bound streaming)
# --------------------------------------------------------------------------
def _ca_gate_kernel(x_ref, a_ref, pt_ref, qt_ref, o_ref, *, h):
    a = a_ref[0]                                                   # (c_t, h+w)
    # Broadcast a_h over w via a 0/1 selector matmul (MXU), fold into x
    # immediately so only one (c_t, hw) f32 intermediate is live at a time.
    gh = jnp.dot(a[:, :h], pt_ref[...], preferred_element_type=jnp.float32)
    tmp = x_ref[0] * gh
    gw = jnp.dot(a[:, h:], qt_ref[...], preferred_element_type=jnp.float32)
    o_ref[0] = tmp * gw


# --------------------------------------------------------------------------
# Host wrapper
# --------------------------------------------------------------------------
def ca_forward(x, params):
    """x: (n, c, h, w) float32. params: dict from init_ca_params (eval-mode BN)."""
    n, c, h, w = x.shape
    hw = h * w
    mip = params["w1"].shape[0]
    f32 = jnp.float32

    cap = _vmem_capacity_bytes()
    budget = max(8 << 20, cap // 4)   # ~16 MiB on v7x, ~32 MiB on v5e/v6e

    # --- fold eval-mode BN (+ conv1 bias) into a single affine ------------
    eps = f32(1e-5)
    scale = params["gamma"] * jax.lax.rsqrt(params["var"] + eps)        # (mip,)
    w1f = params["w1"] * scale[:, None]                                 # (mip, c)
    b1f = (scale * (params["b1"] - params["mean"]) + params["beta"])[:, None]
    bh = params["bh"][:, None]                                          # (c, 1)
    bw = params["bw"][:, None]                                          # (c, 1)

    # --- 0/1 selector matrices (host constants) ----------------------------
    idx = jnp.arange(hw)
    P0 = (idx[:, None] // w == jnp.arange(h)[None, :]).astype(f32)      # (hw, h)
    Q0 = (idx[:, None] % w == jnp.arange(w)[None, :]).astype(f32)       # (hw, w)
    pq_pool = jnp.concatenate([P0 * f32(1.0 / w), Q0 * f32(1.0 / h)], axis=1)
    pt = P0.T                                                            # (h, hw)
    qt = Q0.T                                                            # (w, hw)
    # NOTE: on v5e, casting pt/qt (exact 0/1) and the gates to bfloat16 for the
    # broadcast matmuls gives 2-4x MXU throughput; kept f32 here for exactness.

    x_flat = x.reshape(n, c, hw)          # lane-dense layout, free reshape

    # ------------------- stage 1: coordinate pooling -----------------------
    ct_p, hw_t, pool_bytes = _pick_pool_tiles(c, h, w, budget)
    n_ct_p = c // ct_p
    n_hwt = hw // hw_t
    pooled = pl.pallas_call(
        _ca_pool_kernel,
        out_shape=jax.ShapeDtypeStruct((n, c, h + w), f32),
        grid=(n, n_ct_p, n_hwt),
        in_specs=[
            pl.BlockSpec((1, ct_p, hw_t), lambda b, ci, k: (b, ci, k)),   # x
            pl.BlockSpec((hw_t, h + w), lambda b, ci, k: (k, 0)),         # selectors
        ],
        out_specs=pl.BlockSpec((1, ct_p, h + w), lambda b, ci, k: (b, ci, 0)),
        scratch_shapes=[pltpu.VMEM((ct_p, h + w), f32)],
        compiler_params=pltpu.CompilerParams(
            dimension_semantics=("parallel", "parallel", "arbitrary"),
            vmem_limit_bytes=_vmem_limit_bytes(pool_bytes, cap)),
    )(x_flat, pq_pool)

    # ------------------- stage 2: tiny conv chain --------------------------
    const1 = lambda shape: pl.BlockSpec(shape, lambda b: (0, 0))
    gates = pl.pallas_call(
        functools.partial(_ca_mlp_kernel, h=h),
        out_shape=jax.ShapeDtypeStruct((n, c, h + w), f32),
        grid=(n,),
        in_specs=[
            pl.BlockSpec((1, c, h + w), lambda b: (b, 0, 0)),   # pooled
            const1((mip, c)), const1((mip, 1)),                 # w1 / b1 (BN folded)
            const1((c, mip)), const1((c, 1)),                   # w_h / b_h
            const1((c, mip)), const1((c, 1)),                   # w_w / b_w
        ],
        out_specs=pl.BlockSpec((1, c, h + w), lambda b: (b, 0, 0)),
        compiler_params=pltpu.CompilerParams(
            dimension_semantics=("parallel",)),
    )(pooled, w1f, b1f, params["wh"], bh, params["ww"], bw)

    # ------------------- stage 3: gating ------------------------------------
    ct_g, gate_bytes = _pick_gate_tile(c, h, w, budget)
    n_ct_g = c // ct_g
    const2 = lambda shape: pl.BlockSpec(shape, lambda b, ci: (0, 0))
    out_flat = pl.pallas_call(
        functools.partial(_ca_gate_kernel, h=h),
        out_shape=jax.ShapeDtypeStruct((n, c, hw), f32),
        grid=(n, n_ct_g),
        in_specs=[
            pl.BlockSpec((1, ct_g, hw), lambda b, ci: (b, ci, 0)),        # x
            pl.BlockSpec((1, ct_g, h + w), lambda b, ci: (b, ci, 0)),     # packed gates
            const2((h, hw)),                                              # P0^T
            const2((w, hw)),                                              # Q0^T
        ],
        out_specs=pl.BlockSpec((1, ct_g, hw), lambda b, ci: (b, ci, 0)),
        compiler_params=pltpu.CompilerParams(
            dimension_semantics=("parallel", "parallel"),
            vmem_limit_bytes=_vmem_limit_bytes(gate_bytes, cap)),
    )(x_flat, gates, pt, qt)

    return out_flat.reshape(n, c, h, w)


# --------------------------------------------------------------------------
# Params + pure-JAX reference (mirrors the PyTorch forward, eval-mode BN)
# --------------------------------------------------------------------------
def init_ca_params(key, inp, reduction=16):
    mip = _make_divisible(inp // reduction, 8)
    ks = jax.random.split(key, 8)
    s1 = 1.0 / math.sqrt(inp)
    s2 = 1.0 / math.sqrt(mip)
    params = {
        "w1": jax.random.uniform(ks[0], (mip, inp), jnp.float32, -s1, s1),
        "b1": jax.random.uniform(ks[1], (mip,), jnp.float32, -s1, s1),
        "gamma": jnp.ones((mip,), jnp.float32),
        "beta": jnp.zeros((mip,), jnp.float32),
        "mean": 0.1 * jax.random.normal(ks[2], (mip,), jnp.float32),
        "var": jnp.abs(jax.random.normal(ks[3], (mip,), jnp.float32)) + 0.5,
        "wh": jax.random.uniform(ks[4], (inp, mip), jnp.float32, -s2, s2),
        "bh": jax.random.uniform(ks[5], (inp,), jnp.float32, -s2, s2),
        "ww": jax.random.uniform(ks[6], (inp, mip), jnp.float32, -s2, s2),
        "bw": jax.random.uniform(ks[7], (inp,), jnp.float32, -s2, s2),
    }
    return params, mip


def ca_reference(x, params):
    n, c, h, w = x.shape
    x_h = jnp.mean(x, axis=3)                        # (n, c, h)
    x_w = jnp.mean(x, axis=2)                        # (n, c, w)
    y = jnp.concatenate([x_h, x_w], axis=2)          # (n, c, h+w)
    y = jnp.einsum("mc,nck->nmk", params["w1"], y) + params["b1"][None, :, None]
    y = (y - params["mean"][None, :, None]) * jax.lax.rsqrt(params["var"][None, :, None] + 1e-5)
    y = y * params["gamma"][None, :, None] + params["beta"][None, :, None]
    y = y * jnp.clip(y + 3.0, 0.0, 6.0) / 6.0
    y_h, y_w = y[:, :, :h], y[:, :, h:]
    a_h = jax.nn.sigmoid(jnp.einsum("cm,nmk->nck", params["wh"], y_h) + params["bh"][None, :, None])
    a_w = jax.nn.sigmoid(jnp.einsum("cm,nmk->nck", params["ww"], y_w) + params["bw"][None, :, None])
    return x * a_h[:, :, :, None] * a_w[:, :, None, :]


if __name__ == "__main__":
    key = jax.random.PRNGKey(0)
    kx, kp = jax.random.split(key)

    n, c, h, w = 2, 4, 16, 16
    x = jax.random.normal(kx, (n, c, h, w), jnp.float32)
    params, mip = init_ca_params(kp, inp=c, reduction=16)

    out = jax.jit(ca_forward)(x, params)
    out = jax.block_until_ready(out)

    ref = ca_reference(x, params)
    assert out.shape == (n, c, h, w)
    err = float(jnp.max(jnp.abs(out - ref)))
    assert err < 1e-4, f"mismatch vs pure-JAX reference: {err}"

    print("KERNEL_OK")
</pallas_src>

<mosaic_0001>
module attributes {stable_mosaic.version = 11 : i64} {
  func.func @_ca_pool_kernel(%arg0: i32, %arg1: i32, %arg2: i32, %arg3: memref<1x4x256xf32, #tpu.memory_space<vmem>>, %arg4: memref<256x32xf32, #tpu.memory_space<vmem>>, %arg5: memref<1x4x32xf32, #tpu.memory_space<vmem>>, %arg6: memref<4x32xf32, #tpu.memory_space<vmem>>) attributes {dimension_semantics = [#tpu.dimension_semantics<parallel>, #tpu.dimension_semantics<parallel>, #tpu.dimension_semantics<arbitrary>], iteration_bounds = array<i64: 2, 1, 1>, scalar_prefetch = 0 : i64, scratch_operands = 1 : i64, tpu.core_type = #tpu.core_type<tc>, window_params = [{transform_indices = @transform_0, window_bounds = array<i64: 1, 4, 256>}, {transform_indices = @transform_1, window_bounds = array<i64: 256, 32>}, {transform_indices = @transform_2, window_bounds = array<i64: 1, 4, 32>}]} {
    %c0_i32 = arith.constant 0 : i32
    %0 = arith.cmpi eq, %arg2, %c0_i32 : i32
    %1 = arith.extui %0 : i1 to i32
    %c0_i32_0 = arith.constant 0 : i32
    %2 = arith.cmpi ne, %1, %c0_i32_0 : i32
    scf.if %2 {
      %cst_11 = arith.constant 0.000000e+00 : f32
      %13 = vector.broadcast %cst_11 : f32 to vector<4x32xf32>
      %c0_12 = arith.constant 0 : index
      %c0_13 = arith.constant 0 : index
      %14 = vector.load %arg6[%c0_12, %c0_13] : memref<4x32xf32, #tpu.memory_space<vmem>>, vector<4x32xf32>
      tpu.vector_store %arg6[%c0_12, %c0_13], %13 {strides = array<i32>} : memref<4x32xf32, #tpu.memory_space<vmem>>, vector<4x32xf32>,
    } else {
    }
    %c0 = arith.constant 0 : index
    %c0_1 = arith.constant 0 : index
    %3 = vector.load %arg6[%c0, %c0_1] : memref<4x32xf32, #tpu.memory_space<vmem>>, vector<4x32xf32>
    %c0_2 = arith.constant 0 : index
    %c0_3 = arith.constant 0 : index
    %c0_4 = arith.constant 0 : index
    %4 = vector.load %arg3[%c0_2, %c0_3, %c0_4] : memref<1x4x256xf32, #tpu.memory_space<vmem>>, vector<1x4x256xf32>
    %5 = vector.shape_cast %4 : vector<1x4x256xf32> to vector<4x256xf32>
    %c0_5 = arith.constant 0 : index
    %c0_6 = arith.constant 0 : index
    %6 = vector.load %arg4[%c0_5, %c0_6] : memref<256x32xf32, #tpu.memory_space<vmem>>, vector<256x32xf32>
    %cst = arith.constant dense<0.000000e+00> : vector<4x32xf32>
    %7 = tpu.matmul %5, %6, %cst {dimension_numbers = #tpu.dot_dimension_numbers<[1], [0], [0], [1], [0, 0, 1, 1], [], []>} : vector<4x256xf32>, vector<256x32xf32>, vector<4x32xf32> -> vector<4x32xf32>
    %8 = arith.addf %3, %7 : vector<4x32xf32>
    %c0_7 = arith.constant 0 : index
    %c0_8 = arith.constant 0 : index
    %9 = vector.load %arg6[%c0_7, %c0_8] : memref<4x32xf32, #tpu.memory_space<vmem>>, vector<4x32xf32>
    tpu.vector_store %arg6[%c0_7, %c0_8], %8 {strides = array<i32>} : memref<4x32xf32, #tpu.memory_space<vmem>>, vector<4x32xf32>,
    %c0_i32_9 = arith.constant 0 : i32
    %10 = arith.cmpi eq, %arg2, %c0_i32_9 : i32
    %11 = arith.extui %10 : i1 to i32
    %c0_i32_10 = arith.constant 0 : i32
    %12 = arith.cmpi ne, %11, %c0_i32_10 : i32
    scf.if %12 {
      %c0_11 = arith.constant 0 : index
      %c0_12 = arith.constant 0 : index
      %13 = vector.load %arg6[%c0_11, %c0_12] : memref<4x32xf32, #tpu.memory_space<vmem>>, vector<4x32xf32>
      %c0_13 = arith.constant 0 : index
      %c0_14 = arith.constant 0 : index
      %c0_15 = arith.constant 0 : index
      %14 = vector.load %arg5[%c0_13, %c0_14, %c0_15] : memref<1x4x32xf32, #tpu.memory_space<vmem>>, vector<1x4x32xf32>
      %15 = vector.shape_cast %14 : vector<1x4x32xf32> to vector<4x32xf32>
      %16 = vector.shape_cast %13 : vector<4x32xf32> to vector<1x4x32xf32>
      tpu.vector_store %arg5[%c0_13, %c0_14, %c0_15], %16 {strides = array<i32>} : memref<1x4x32xf32, #tpu.memory_space<vmem>>, vector<1x4x32xf32>,
    } else {
    }
    return
  }
  func.func @transform_0(%arg0: i32, %arg1: i32, %arg2: i32) -> (i32, i32, i32) {
    %c0_i32 = arith.constant 0 : i32
    return %arg0, %arg1, %arg2 : i32, i32, i32
  }
  func.func @transform_1(%arg0: i32, %arg1: i32, %arg2: i32) -> (i32, i32) {
    %c0_i32 = arith.constant 0 : i32
    %c0_i32_0 = arith.constant 0 : i32
    return %arg2, %c0_i32 : i32, i32
  }
  func.func @transform_2(%arg0: i32, %arg1: i32, %arg2: i32) -> (i32, i32, i32) {
    %c0_i32 = arith.constant 0 : i32
    %c0_i32_0 = arith.constant 0 : i32
    return %arg0, %arg1, %c0_i32 : i32, i32, i32
  }
}

module attributes {stable_mosaic.version = 11 : i64} {
  func.func @_ca_mlp_kernel(%arg0: i32, %arg1: memref<1x4x32xf32, #tpu.memory_space<vmem>>, %arg2: memref<8x4xf32, #tpu.memory_space<vmem>>, %arg3: memref<8x1xf32, #tpu.memory_space<vmem>>, %arg4: memref<4x8xf32, #tpu.memory_space<vmem>>, %arg5: memref<4x1xf32, #tpu.memory_space<vmem>>, %arg6: memref<4x8xf32, #tpu.memory_space<vmem>>, %arg7: memref<4x1xf32, #tpu.memory_space<vmem>>, %arg8: memref<1x4x32xf32, #tpu.memory_space<vmem>>) attributes {dimension_semantics = [#tpu.dimension_semantics<parallel>], iteration_bounds = array<i64: 2>, scalar_prefetch = 0 : i64, scratch_operands = 0 : i64, tpu.core_type = #tpu.core_type<tc>, window_params = [{transform_indices = @transform_0, window_bounds = array<i64: 1, 4, 32>}, {pipeline_mode = #tpu.pipeline_mode<synchronous>, transform_indices = @transform_1, window_bounds = array<i64: 8, 4>}, {pipeline_mode = #tpu.pipeline_mode<synchronous>, transform_indices = @transform_2, window_bounds = array<i64: 8, 1>}, {pipeline_mode = #tpu.pipeline_mode<synchronous>, transform_indices = @transform_3, window_bounds = array<i64: 4, 8>}, {pipeline_mode = #tpu.pipeline_mode<synchronous>, transform_indices = @transform_4, window_bounds = array<i64: 4, 1>}, {pipeline_mode = #tpu.pipeline_mode<synchronous>, transform_indices = @transform_5, window_bounds = array<i64: 4, 8>}, {pipeline_mode = #tpu.pipeline_mode<synchronous>, transform_indices = @transform_6, window_bounds = array<i64: 4, 1>}, {transform_indices = @transform_7, window_bounds = array<i64: 1, 4, 32>}]} {
    %c0 = arith.constant 0 : index
    %c0_0 = arith.constant 0 : index
    %c0_1 = arith.constant 0 : index
    %0 = vector.load %arg1[%c0, %c0_0, %c0_1] : memref<1x4x32xf32, #tpu.memory_space<vmem>>, vector<1x4x32xf32>
    %1 = vector.shape_cast %0 : vector<1x4x32xf32> to vector<4x32xf32>
    %c0_2 = arith.constant 0 : index
    %c0_3 = arith.constant 0 : index
    %2 = vector.load %arg2[%c0_2, %c0_3] : memref<8x4xf32, #tpu.memory_space<vmem>>, vector<8x4xf32>
    %cst = arith.constant dense<0.000000e+00> : vector<8x32xf32>
    %3 = tpu.matmul %2, %1, %cst {dimension_numbers = #tpu.dot_dimension_numbers<[1], [0], [0], [1], [0, 0, 1, 1], [], []>} : vector<8x4xf32>, vector<4x32xf32>, vector<8x32xf32> -> vector<8x32xf32>
    %c0_4 = arith.constant 0 : index
    %c0_5 = arith.constant 0 : index
    %4 = vector.load %arg3[%c0_4, %c0_5] : memref<8x1xf32, #tpu.memory_space<vmem>>, vector<8x1xf32>
    %5 = vector.broadcast %4 : vector<8x1xf32> to vector<8x32xf32>
    %6 = arith.addf %3, %5 : vector<8x32xf32>
    %cst_6 = arith.constant 3.000000e+00 : f32
    %7 = vector.broadcast %cst_6 : f32 to vector<8x32xf32>
    %8 = arith.addf %6, %7 : vector<8x32xf32>
    %cst_7 = arith.constant 0.000000e+00 : f32
    %cst_8 = arith.constant 6.000000e+00 : f32
    %9 = vector.broadcast %cst_7 : f32 to vector<8x32xf32>
    %10 = arith.maximumf %9, %8 : vector<8x32xf32>
    %11 = vector.broadcast %cst_8 : f32 to vector<8x32xf32>
    %12 = arith.minimumf %11, %10 : vector<8x32xf32>
    %13 = arith.mulf %6, %12 : vector<8x32xf32>
    %cst_9 = arith.constant 0.166666672 : f32
    %14 = vector.broadcast %cst_9 : f32 to vector<8x32xf32>
    %15 = arith.mulf %13, %14 : vector<8x32xf32>
    %c0_10 = arith.constant 0 : index
    %c0_11 = arith.constant 0 : index
    %16 = vector.load %arg4[%c0_10, %c0_11] : memref<4x8xf32, #tpu.memory_space<vmem>>, vector<4x8xf32>
    %cst_12 = arith.constant dense<0.000000e+00> : vector<4x32xf32>
    %17 = tpu.matmul %16, %15, %cst_12 {dimension_numbers = #tpu.dot_dimension_numbers<[1], [0], [0], [1], [0, 0, 1, 1], [], []>} : vector<4x8xf32>, vector<8x32xf32>, vector<4x32xf32> -> vector<4x32xf32>
    %c0_13 = arith.constant 0 : index
    %c0_14 = arith.constant 0 : index
    %18 = vector.load %arg5[%c0_13, %c0_14] : memref<4x1xf32, #tpu.memory_space<vmem>>, vector<4x1xf32>
    %19 = vector.broadcast %18 : vector<4x1xf32> to vector<4x32xf32>
    %20 = arith.addf %17, %19 : vector<4x32xf32>
    %21 = arith.negf %20 : vector<4x32xf32>
    %22 = math.exp %21 : vector<4x32xf32>
    %cst_15 = arith.constant 1.000000e+00 : f32
    %23 = vector.broadcast %cst_15 : f32 to vector<4x32xf32>
    %24 = arith.addf %23, %22 : vector<4x32xf32>
    %25 = arith.divf %23, %24 : vector<4x32xf32>
    %c0_16 = arith.constant 0 : index
    %c0_17 = arith.constant 0 : index
    %26 = vector.load %arg6[%c0_16, %c0_17] : memref<4x8xf32, #tpu.memory_space<vmem>>, vector<4x8xf32>
    %cst_18 = arith.constant dense<0.000000e+00> : vector<4x32xf32>
    %27 = tpu.matmul %26, %15, %cst_18 {dimension_numbers = #tpu.dot_dimension_numbers<[1], [0], [0], [1], [0, 0, 1, 1], [], []>} : vector<4x8xf32>, vector<8x32xf32>, vector<4x32xf32> -> vector<4x32xf32>
    %c0_19 = arith.constant 0 : index
    %c0_20 = arith.constant 0 : index
    %28 = vector.load %arg7[%c0_19, %c0_20] : memref<4x1xf32, #tpu.memory_space<vmem>>, vector<4x1xf32>
    %29 = vector.broadcast %28 : vector<4x1xf32> to vector<4x32xf32>
    %30 = arith.addf %27, %29 : vector<4x32xf32>
    %31 = arith.negf %30 : vector<4x32xf32>
    %32 = math.exp %31 : vector<4x32xf32>
    %cst_21 = arith.constant 1.000000e+00 : f32
    %33 = vector.broadcast %cst_21 : f32 to vector<4x32xf32>
    %34 = arith.addf %33, %32 : vector<4x32xf32>
    %35 = arith.divf %33, %34 : vector<4x32xf32>
    %36 = tpu.iota {dimensions = array<i32: 1>} : vector<4x32xi32>
    %c16_i32 = arith.constant 16 : i32
    %37 = vector.broadcast %c16_i32 : i32 to vector<4x32xi32>
    %38 = arith.cmpi slt, %36, %37 : vector<4x32xi32>
    %39 = arith.select %38, %25, %35 : vector<4x32xi1>, vector<4x32xf32>
    %c0_22 = arith.constant 0 : index
    %c0_23 = arith.constant 0 : index
    %c0_24 = arith.constant 0 : index
    %40 = vector.load %arg8[%c0_22, %c0_23, %c0_24] : memref<1x4x32xf32, #tpu.memory_space<vmem>>, vector<1x4x32xf32>
    %41 = vector.shape_cast %40 : vector<1x4x32xf32> to vector<4x32xf32>
    %42 = vector.shape_cast %39 : vector<4x32xf32> to vector<1x4x32xf32>
    tpu.vector_store %arg8[%c0_22, %c0_23, %c0_24], %42 {strides = array<i32>} : memref<1x4x32xf32, #tpu.memory_space<vmem>>, vector<1x4x32xf32>,
    return
  }
  func.func @transform_0(%arg0: i32) -> (i32, i32, i32) {
    %c0_i32 = arith.constant 0 : i32
    %c0_i32_0 = arith.constant 0 : i32
    %c0_i32_1 = arith.constant 0 : i32
    return %arg0, %c0_i32, %c0_i32_0 : i32, i32, i32
  }
  func.func @transform_1(%arg0: i32) -> (i32, i32) {
    %c0_i32 = arith.constant 0 : i32
    %c0_i32_0 = arith.constant 0 : i32
    %c0_i32_1 = arith.constant 0 : i32
    return %c0_i32, %c0_i32_0 : i32, i32
  }
  func.func @transform_2(%arg0: i32) -> (i32, i32) {
    %c0_i32 = arith.constant 0 : i32
    %c0_i32_0 = arith.constant 0 : i32
    %c0_i32_1 = arith.constant 0 : i32
    return %c0_i32, %c0_i32_0 : i32, i32
  }
  func.func @transform_3(%arg0: i32) -> (i32, i32) {
    %c0_i32 = arith.constant 0 : i32
    %c0_i32_0 = arith.constant 0 : i32
    %c0_i32_1 = arith.constant 0 : i32
    return %c0_i32, %c0_i32_0 : i32, i32
  }
  func.func @transform_4(%arg0: i32) -> (i32, i32) {
    %c0_i32 = arith.constant 0 : i32
    %c0_i32_0 = arith.constant 0 : i32
    %c0_i32_1 = arith.constant 0 : i32
    return %c0_i32, %c0_i32_0 : i32, i32
  }
  func.func @transform_5(%arg0: i32) -> (i32, i32) {
    %c0_i32 = arith.constant 0 : i32
    %c0_i32_0 = arith.constant 0 : i32
    %c0_i32_1 = arith.constant 0 : i32
    return %c0_i32, %c0_i32_0 : i32, i32
  }
  func.func @transform_6(%arg0: i32) -> (i32, i32) {
    %c0_i32 = arith.constant 0 : i32
    %c0_i32_0 = arith.constant 0 : i32
    %c0_i32_1 = arith.constant 0 : i32
    return %c0_i32, %c0_i32_0 : i32, i32
  }
  func.func @transform_7(%arg0: i32) -> (i32, i32, i32) {
    %c0_i32 = arith.constant 0 : i32
    %c0_i32_0 = arith.constant 0 : i32
    %c0_i32_1 = arith.constant 0 : i32
    return %arg0, %c0_i32, %c0_i32_0 : i32, i32, i32
  }
}

module attributes {stable_mosaic.version = 11 : i64} {
  func.func @_ca_gate_kernel(%arg0: i32, %arg1: i32, %arg2: memref<1x4x256xf32, #tpu.memory_space<vmem>>, %arg3: memref<1x4x32xf32, #tpu.memory_space<vmem>>, %arg4: memref<16x256xf32, #tpu.memory_space<vmem>>, %arg5: memref<16x256xf32, #tpu.memory_space<vmem>>, %arg6: memref<1x4x256xf32, #tpu.memory_space<vmem>>) attributes {dimension_semantics = [#tpu.dimension_semantics<parallel>, #tpu.dimension_semantics<parallel>], iteration_bounds = array<i64: 2, 1>, scalar_prefetch = 0 : i64, scratch_operands = 0 : i64, tpu.core_type = #tpu.core_type<tc>, window_params = [{transform_indices = @transform_0, window_bounds = array<i64: 1, 4, 256>}, {transform_indices = @transform_1, window_bounds = array<i64: 1, 4, 32>}, {pipeline_mode = #tpu.pipeline_mode<synchronous>, transform_indices = @transform_2, window_bounds = array<i64: 16, 256>}, {pipeline_mode = #tpu.pipeline_mode<synchronous>, transform_indices = @transform_3, window_bounds = array<i64: 16, 256>}, {transform_indices = @transform_4, window_bounds = array<i64: 1, 4, 256>}]} {
    %c0 = arith.constant 0 : index
    %c0_0 = arith.constant 0 : index
    %c0_1 = arith.constant 0 : index
    %0 = vector.load %arg3[%c0, %c0_0, %c0_1] : memref<1x4x32xf32, #tpu.memory_space<vmem>>, vector<1x4x32xf32>
    %1 = vector.shape_cast %0 : vector<1x4x32xf32> to vector<4x32xf32>
    %2 = vector.extract_strided_slice %1 {offsets = [0, 0], sizes = [4, 16], strides = [1, 1]} : vector<4x32xf32> to vector<4x16xf32>
    %c0_2 = arith.constant 0 : index
    %c0_3 = arith.constant 0 : index
    %3 = vector.load %arg4[%c0_2, %c0_3] : memref<16x256xf32, #tpu.memory_space<vmem>>, vector<16x256xf32>
    %cst = arith.constant dense<0.000000e+00> : vector<4x256xf32>
    %4 = tpu.matmul %2, %3, %cst {dimension_numbers = #tpu.dot_dimension_numbers<[1], [0], [0], [1], [0, 0, 1, 1], [], []>} : vector<4x16xf32>, vector<16x256xf32>, vector<4x256xf32> -> vector<4x256xf32>
    %c0_4 = arith.constant 0 : index
    %c0_5 = arith.constant 0 : index
    %c0_6 = arith.constant 0 : index
    %5 = vector.load %arg2[%c0_4, %c0_5, %c0_6] : memref<1x4x256xf32, #tpu.memory_space<vmem>>, vector<1x4x256xf32>
    %6 = vector.shape_cast %5 : vector<1x4x256xf32> to vector<4x256xf32>
    %7 = arith.mulf %6, %4 : vector<4x256xf32>
    %8 = vector.extract_strided_slice %1 {offsets = [0, 16], sizes = [4, 16], strides = [1, 1]} : vector<4x32xf32> to vector<4x16xf32>
    %c0_7 = arith.constant 0 : index
    %c0_8 = arith.constant 0 : index
    %9 = vector.load %arg5[%c0_7, %c0_8] : memref<16x256xf32, #tpu.memory_space<vmem>>, vector<16x256xf32>
    %cst_9 = arith.constant dense<0.000000e+00> : vector<4x256xf32>
    %10 = tpu.matmul %8, %9, %cst_9 {dimension_numbers = #tpu.dot_dimension_numbers<[1], [0], [0], [1], [0, 0, 1, 1], [], []>} : vector<4x16xf32>, vector<16x256xf32>, vector<4x256xf32> -> vector<4x256xf32>
    %11 = arith.mulf %7, %10 : vector<4x256xf32>
    %c0_10 = arith.constant 0 : index
    %c0_11 = arith.constant 0 : index
    %c0_12 = arith.constant 0 : index
    %12 = vector.load %arg6[%c0_10, %c0_11, %c0_12] : memref<1x4x256xf32, #tpu.memory_space<vmem>>, vector<1x4x256xf32>
    %13 = vector.shape_cast %12 : vector<1x4x256xf32> to vector<4x256xf32>
    %14 = vector.shape_cast %11 : vector<4x256xf32> to vector<1x4x256xf32>
    tpu.vector_store %arg6[%c0_10, %c0_11, %c0_12], %14 {strides = array<i32>} : memref<1x4x256xf32, #tpu.memory_space<vmem>>, vector<1x4x256xf32>,
    return
  }
  func.func @transform_0(%arg0: i32, %arg1: i32) -> (i32, i32, i32) {
    %c0_i32 = arith.constant 0 : i32
    %c0_i32_0 = arith.constant 0 : i32
    return %arg0, %arg1, %c0_i32 : i32, i32, i32
  }
  func.func @transform_1(%arg0: i32, %arg1: i32) -> (i32, i32, i32) {
    %c0_i32 = arith.constant 0 : i32
    %c0_i32_0 = arith.constant 0 : i32
    return %arg0, %arg1, %c0_i32 : i32, i32, i32
  }
  func.func @transform_2(%arg0: i32, %arg1: i32) -> (i32, i32) {
    %c0_i32 = arith.constant 0 : i32
    %c0_i32_0 = arith.constant 0 : i32
    %c0_i32_1 = arith.constant 0 : i32
    return %c0_i32, %c0_i32_0 : i32, i32
  }
  func.func @transform_3(%arg0: i32, %arg1: i32) -> (i32, i32) {
    %c0_i32 = arith.constant 0 : i32
    %c0_i32_0 = arith.constant 0 : i32
    %c0_i32_1 = arith.constant 0 : i32
    return %c0_i32, %c0_i32_0 : i32, i32
  }
  func.func @transform_4(%arg0: i32, %arg1: i32) -> (i32, i32, i32) {
    %c0_i32 = arith.constant 0 : i32
    %c0_i32_0 = arith.constant 0 : i32
    return %arg0, %arg1, %c0_i32 : i32, i32, i32
  }
}

</mosaic_0001>

<llo_original>
// kernel: ca_forward.5
$region0: #{ca_forward.5}
  #allocation0 [shape = 'u32[]', space=smem, size = 0x4, offset = 0x4, fixed_abs, tag = 'smem constant byte address 0x4 - core index']
  #allocation1 [shape = 'u32[144,128]{1,0:T(1,128)}', space=vmem, size = 0x12000, scoped, tag = 'internal scratch']
  %s0 = inlined_call_operand.vmem [shape: f32[2,4,256], index: 0, kind: input, shape index: {}]
  %s1 = inlined_call_operand.vmem [shape: f32[2,4,32], index: 1, kind: input, shape index: {}]
  %s2 = inlined_call_operand.vmem [shape: f32[16,256], index: 2, kind: input, shape index: {}]
  %s3 = inlined_call_operand.vmem [shape: f32[16,256], index: 3, kind: input, shape index: {}]
  %s4 = inlined_call_operand.vmem [shape: f32[2,4,256], index: 4, kind: output, shape index: {}]
  %s5 = sld [smem:[#allocation0]]
  $region49: #{ca_forward.5} parent=0
    _
  %s7 = ssub.s32 1, %s5
  %s8 = scalar_select 0, %s7, %s5
  loop: start=0, step=1, limit=4
  $region2: #{ca_forward.5} parent=0 // loop_pre_header
    _
  $region3: #{ca_forward.5} parent=0 // loop_header
    %s10 = sphi 0, %s14
    %p11 = scmp.ge.s32.totalorder %s10, 4
    %s17 = sphi 0, %s29
    %s18 = sphi 0, %s25
    %s19 = sphi 0, %s17
    %s20 = sphi 0, %s18
    %s21 = sphi 0, %s19
    %s22 = sphi 0, %s20
    %s34 = sphi 0, %s36
    %s37 = sphi 0, %s34
    %s38 = sphi 0, %s37
    %s54 = sphi 0, %s38
    %s62 = sphi 0, %s64
    %s65 = sphi 0, %s62
    %s66 = sphi 0, %s65
    %s82 = sphi 0, %s66
    %s86 = sphi 0, %s86
    %s88 = sphi 0, %s86
    %s89 = sphi 0, %s88
    %s103 = sphi 0, %s89
    %s107 = sphi 0, %s107
    %s109 = sphi 0, %s107
    %s110 = sphi 0, %s109
    %s124 = sphi 0, %s110
    %s132 = sphi 0, %s134
    %s135 = sphi 0, %s132
    %s136 = sphi 0, %s135
    %s152 = sphi 0, %s136
  $region4: #{ca_forward.5} parent=0 // loop_header_branch
    %13 = sbr.rel (%p11) target = $region8
  $region5: #{ca_forward.5} parent=0 // loop_body
    %s15 = ssub.s32 %s10, 1
    %s16 = ssub.s32 %s10, 2
    %s23 = sadd.s32 1, %s18
    %p24 = scmp.ge.s32.totalorder %s23, 1
    %s25 = scalar_select %p24, 0, %s23
    %s26 = sadd.s32 1, %s17
    %s27 = scalar_select %p24, %s26, %s17
    %p28 = scmp.ge.s32.totalorder %s27, 2
    %s29 = scalar_select %p28, 0, %s27
    %s30 = ssub.s32 %s17, %s29
    %s31 = ssub.s32 %s18, %s25
    %s32 = sor.u32 %s30, %s31
    %p33 = scmp.eq.s32.totalorder %s32, 0
    %s35 = sadd.s32 %s34, 1
    %s36 = scalar_select %p33, %s34, %s35
    %p39 = pneg %p33
    %p40 = scmp.eq.s32.totalorder %s10, 1
    %p41 = por %p39, %p40
    %p42 = scmp.ne.s32.totalorder %s34, %s37
    %p43 = scmp.eq.s32.totalorder %s10, 0
    %p44 = por %p42, %p43
    %p45 = scmp.ne.s32.totalorder %s34, %s37
    %p46 = scmp.eq.s32.totalorder %s15, 1
    %p47 = por %p45, %p46
    %p48 = scmp.ne.s32.totalorder %s37, %s38
    %p49 = scmp.eq.s32.totalorder %s15, 0
    %p50 = por %p48, %p49
    %p51 = scmp.ne.s32.totalorder %s37, %s38
    %p52 = scmp.eq.s32.totalorder %s16, 1
    %p53 = por %p51, %p52
    %p55 = scmp.ne.s32.totalorder %s38, %s54
    %p56 = scmp.eq.s32.totalorder %s16, 0
    %p57 = por %p55, %p56
    %s58 = ssub.s32 %s17, %s29
    %s59 = ssub.s32 %s18, %s25
    %s60 = sor.u32 %s58, %s59
    %p61 = scmp.eq.s32.totalorder %s60, 0
    %s63 = sadd.s32 %s62, 1
    %s64 = scalar_select %p61, %s62, %s63
    %p67 = pneg %p61
    %p68 = scmp.eq.s32.totalorder %s10, 1
    %p69 = por %p67, %p68
    %p70 = scmp.ne.s32.totalorder %s62, %s65
    %p71 = scmp.eq.s32.totalorder %s10, 0
    %p72 = por %p70, %p71
    %p73 = scmp.ne.s32.totalorder %s62, %s65
    %p74 = scmp.eq.s32.totalorder %s15, 1
    %p75 = por %p73, %p74
    %p76 = scmp.ne.s32.totalorder %s65, %s66
    %p77 = scmp.eq.s32.totalorder %s15, 0
    %p78 = por %p76, %p77
    %p79 = scmp.ne.s32.totalorder %s65, %s66
    %p80 = scmp.eq.s32.totalorder %s16, 1
    %p81 = por %p79, %p80
    %p83 = scmp.ne.s32.totalorder %s66, %s82
    %p84 = scmp.eq.s32.totalorder %s16, 0
    %p85 = por %p83, %p84
    %s87 = sadd.s32 %s86, 1
    %p90 = scmp.eq.s32.totalorder %s10, 1
    %p91 = scmp.ne.s32.totalorder %s86, %s88
    %p92 = scmp.eq.s32.totalorder %s10, 0
    %p93 = por %p91, %p92
    %p94 = scmp.ne.s32.totalorder %s86, %s88
    %p95 = scmp.eq.s32.totalorder %s15, 1
    %p96 = por %p94, %p95
    %p97 = scmp.ne.s32.totalorder %s88, %s89
    %p98 = scmp.eq.s32.totalorder %s15, 0
    %p99 = por %p97, %p98
    %p100 = scmp.ne.s32.totalorder %s88, %s89
    %p101 = scmp.eq.s32.totalorder %s16, 1
    %p102 = por %p100, %p101
    %p104 = scmp.ne.s32.totalorder %s89, %s103
    %p105 = scmp.eq.s32.totalorder %s16, 0
    %p106 = por %p104, %p105
    %s108 = sadd.s32 %s107, 1
    %p111 = scmp.eq.s32.totalorder %s10, 1
    %p112 = scmp.ne.s32.totalorder %s107, %s109
    %p113 = scmp.eq.s32.totalorder %s10, 0
    %p114 = por %p112, %p113
    %p115 = scmp.ne.s32.totalorder %s107, %s109
    %p116 = scmp.eq.s32.totalorder %s15, 1
    %p117 = por %p115, %p116
    %p118 = scmp.ne.s32.totalorder %s109, %s110
    %p119 = scmp.eq.s32.totalorder %s15, 0
    %p120 = por %p118, %p119
    %p121 = scmp.ne.s32.totalorder %s109, %s110
    %p122 = scmp.eq.s32.totalorder %s16, 1
    %p123 = por %p121, %p122
    %p125 = scmp.ne.s32.totalorder %s110, %s124
    %p126 = scmp.eq.s32.totalorder %s16, 0
    %p127 = por %p125, %p126
    %s128 = ssub.s32 %s17, %s29
    %s129 = ssub.s32 %s18, %s25
    %s130 = sor.u32 %s128, %s129
    %p131 = scmp.eq.s32.totalorder %s130, 0
    %s133 = sadd.s32 %s132, 1
    %s134 = scalar_select %p131, %s132, %s133
    %p137 = pneg %p131
    %p138 = scmp.eq.s32.totalorder %s10, 1
    %p139 = por %p137, %p138
    %p140 = scmp.ne.s32.totalorder %s132, %s135
    %p141 = scmp.eq.s32.totalorder %s10, 0
    %p142 = por %p140, %p141
    %p143 = scmp.ne.s32.totalorder %s132, %s135
    %p144 = scmp.eq.s32.totalorder %s15, 1
    %p145 = por %p143, %p144
    %p146 = scmp.ne.s32.totalorder %s135, %s136
    %p147 = scmp.eq.s32.totalorder %s15, 0
    %p148 = por %p146, %p147
    %p149 = scmp.ne.s32.totalorder %s135, %s136
    %p150 = scmp.eq.s32.totalorder %s16, 1
    %p151 = por %p149, %p150
    %p153 = scmp.ne.s32.totalorder %s136, %s152
    %p154 = scmp.eq.s32.totalorder %s16, 0
    %p155 = por %p153, %p154
    %p156 = scmp.le.s32.totalorder 1, %s10
    %p157 = scmp.lt.s32.totalorder %s10, 3
    %p158 = pnand %p156, %p157
    %p159 = pneg %p158
    // Predicated region
    $region9: #{ca_forward.5} parent=5 // pred_check
      _
    $region10: #{ca_forward.5} parent=5 // pred_check_branch
      %161 = sbr.rel (%p158) target = $region12
    $region11: #{ca_forward.5} parent=5 // pred_region
      %s162 = ssub.s32 %s10, 1
      // Predicated region
      $region13: #{ca_forward.5} parent=11 // pred_check
        %p163 = pneg %p99
      $region14: #{ca_forward.5} parent=11 // pred_check_branch
        %165 = sbr.rel (%p163) target = $region16
      $region15: #{ca_forward.5} parent=11 // pred_region
        _
      $region16: #{ca_forward.5} parent=11 // pred_fallthru
        _
      // Predicated region
      $region17: #{ca_forward.5} parent=11 // pred_check
        %p166 = pneg %p120
      $region18: #{ca_forward.5} parent=11 // pred_check_branch
        %168 = sbr.rel (%p166) target = $region20
      $region19: #{ca_forward.5} parent=11 // pred_region
        _
      $region20: #{ca_forward.5} parent=11 // pred_fallthru
        _
    $region12: #{ca_forward.5} parent=5 // pred_fallthru
      _
    %p169 = scmp.lt.s32.totalorder %s10, 2
    // Predicated region
    $region21: #{ca_forward.5} parent=5 // pred_check
      %p170 = pneg %p169
    $region22: #{ca_forward.5} parent=5 // pred_check_branch
      %172 = sbr.rel (%p170) target = $region24
    $region23: #{ca_forward.5} parent=5 // pred_region
      // Predicated region
      $region25: #{ca_forward.5} parent=23 // pred_check
        %p173 = pneg %p44
      $region26: #{ca_forward.5} parent=23 // pred_check_branch
        %175 = sbr.rel (%p173) target = $region28
      $region27: #{ca_forward.5} parent=23 // pred_region
        %p176 = scmp.lt.s32.totalorder %s17, 1
        %s177 = scalar_select %p176, %s17, 1
        %p178 = scmp.lt.s32.totalorder %s18, 0
        %s179 = scalar_select %p178, %s18, 0
        %s180 = smul.addr %s179, 2
        %s181 = smul.addr %s177, 2
        %s182 = sadd.s32 %s180, %s181
        %s183 = smul.addr %s182, 4
        %s184 = scalar_lea.vmem %s0, %s183
      $region28: #{ca_forward.5} parent=23 // pred_fallthru
        _
      // Predicated region
      $region29: #{ca_forward.5} parent=23 // pred_check
        %p185 = pneg %p72
      $region30: #{ca_forward.5} parent=23 // pred_check_branch
        %187 = sbr.rel (%p185) target = $region32
      $region31: #{ca_forward.5} parent=23 // pred_region
        %p188 = scmp.lt.s32.totalorder %s17, 1
        %s189 = scalar_select %p188, %s17, 1
        %p190 = scmp.lt.s32.totalorder %s18, 0
        %s191 = scalar_select %p190, %s18, 0
        %s192 = sadd.s32 %s191, %s189
        %s193 = smul.addr %s192, 4
        %s194 = scalar_lea.vmem %s1, %s193
      $region32: #{ca_forward.5} parent=23 // pred_fallthru
        _
    $region24: #{ca_forward.5} parent=5 // pred_fallthru
      _
    %p195 = scmp.le.s32.totalorder 1, %s10
    %p196 = scmp.lt.s32.totalorder %s10, 3
    %p197 = pnand %p195, %p196
    %p198 = pneg %p197
    // Predicated region
    $region33: #{ca_forward.5} parent=5 // pred_check
      _
    $region34: #{ca_forward.5} parent=5 // pred_check_branch
      %200 = sbr.rel (%p197) target = $region36
    $region35: #{ca_forward.5} parent=5 // pred_region
      %s201 = ssub.s32 %s10, 1
      %p202 = scmp.lt.s32.totalorder %s19, 1
      %s203 = scalar_select %p202, %s19, 1
      %p204 = scmp.lt.s32.totalorder %s20, 0
      %s205 = scalar_select %p204, %s20, 0
      %s206 = smul.addr %s205, 2
      %s207 = smul.addr %s203, 2
      %s208 = sadd.s32 %s206, %s207
      %s209 = smul.addr %s208, 4
      %s210 = scalar_lea.vmem %s0, %s209
      %p211 = pneg %p50
      %p212 = pneg %p47
      %p213 = scmp.lt.s32.totalorder %s19, 1
      %s214 = scalar_select %p213, %s19, 1
      %p215 = scmp.lt.s32.totalorder %s20, 0
      %s216 = scalar_select %p215, %s20, 0
      %s217 = sadd.s32 %s216, %s214
      %s218 = smul.addr %s217, 4
      %s219 = scalar_lea.vmem %s1, %s218
      %p220 = pneg %p78
      %p221 = pneg %p75
      %p222 = pneg %p99
      %p223 = pneg %p96
      %p224 = pneg %p120
      %p225 = pneg %p117
      %p226 = pneg %p148
      %p227 = pneg %p145
      %p228 = scmp.lt.s32.totalorder %s19, 1
      %s229 = scalar_select %p228, %s19, 1
      %p230 = scmp.lt.s32.totalorder %s20, 0
      %s231 = scalar_select %p230, %s20, 0
      %s232 = smul.addr %s231, 2
      %s233 = smul.addr %s229, 2
      %s234 = sadd.s32 %s232, %s233
      %s235 = smul.addr %s234, 4
      %s236 = scalar_lea.vmem %s4, %s235
      %p237 = scmp.lt.s32.totalorder %s19, 1
      %s238 = scalar_select %p237, %s19, 1
      %p239 = scmp.lt.s32.totalorder %s20, 0
      %s240 = scalar_select %p239, %s20, 0
      %s241 = smul.addr %s240, 2
      %s242 = smul.addr %s238, 2
      %s243 = sadd.s32 %s241, %s242
      %s244 = smul.addr %s243, 4
      %s245 = scalar_lea.vmem %s0, %s244
      %p246 = scmp.lt.s32.totalorder %s19, 1
      %s247 = scalar_select %p246, %s19, 1
      %p248 = scmp.lt.s32.totalorder %s20, 0
      %s249 = scalar_select %p248, %s20, 0
      %s250 = sadd.s32 %s249, %s247
      %s251 = smul.addr %s250, 4
      %s252 = scalar_lea.vmem %s1, %s251
      %p253 = scmp.lt.s32.totalorder %s19, 1
      %s254 = scalar_select %p253, %s19, 1
      %p255 = scmp.lt.s32.totalorder %s20, 0
      %s256 = scalar_select %p255, %s20, 0
      %s257 = smul.addr %s256, 2
      %s258 = smul.addr %s254, 2
      %s259 = sadd.s32 %s257, %s258
      %s260 = smul.addr %s259, 4
      %s261 = scalar_lea.vmem %s4, %s260
      %v262 = vld [vmem:[%s252] sm:$0xf]
      %v263 = vld [vmem:[%s2] sm:$0xff]
      %v264 = vld [vmem:[%s2 + $0x8] sm:$0xff]
      %v265 = vld [vmem:[%s2 + $0x10] sm:$0xff]
      %v266 = vld [vmem:[%s2 + $0x18] sm:$0xff]
      %vm267 = vcmask 130048
      %v269 = vsel %vm267, %v262, 0
      %271 = vmatprep.subr.mxu0 0.0
      %272 = vmatpush1.msra.mxu0 0.0
      %273 = vmatprep.subr.mxu0 0.0
      %274 = vmatpush1.msra.mxu0 0.0
      %275 = vmatprep.subr.mxu0 0.0
      %276 = vmatpush1.msra.mxu0 0.0
      %277 = vmatprep.subr.mxu0 0.0
      %278 = vmatpush1.msra.mxu0 0.0
      %279 = vmatprep.subr.mxu0 0.0
      %280 = vmatpush1.msra.mxu0 0.0
      %281 = vmatprep.subr.mxu0 0.0
      %282 = vmatpush1.msra.mxu0 0.0
      %283 = vmatprep.subr.mxu0 0.0
      %284 = vmatpush1.msra.mxu0 0.0
      %285 = vmatprep.subr.mxu0 0.0
      %286 = vmatpush1.msra.mxu0 0.0
      %287 = vmatprep.subr.mxu0 0.0
      %288 = vmatpush1.msra.mxu0 0.0
      %289 = vmatprep.subr.mxu0 0.0
      %290 = vmatpush1.msra.mxu0 0.0
      %291 = vmatprep.subr.mxu0 0.0
      %292 = vmatpush1.msra.mxu0 0.0
      %293 = vmatprep.subr.mxu0 0.0
      %294 = vmatpush1.msra.mxu0 0.0
      %295 = vmatprep.subr.mxu0 0.0
      %296 = vmatpush1.msra.mxu0 0.0
      %297 = vmatprep.subr.mxu0 0.0
      %298 = vmatpush1.msra.mxu0 0.0
      %299 = vmatprep.subr.mxu0 %v266
      %300 = vmatpush1.msra.mxu0 %v265
      %301 = vmatprep.subr.mxu0 %v264
      %302 = vmatpush1.msra.mxu0 %v263
      %303 = vmatprep.subr.mxu0 0.0
      %304 = vmatpush2.msra.mxu0 0.0
      %305 = vmatprep.subr.mxu0 0.0
      %306 = vmatpush2.msra.mxu0 0.0
      %307 = vmatprep.subr.mxu0 0.0
      %308 = vmatpush2.msra.mxu0 0.0
      %309 = vmatprep.subr.mxu0 0.0
      %310 = vmatpush2.msra.mxu0 0.0
      %311 = vmatprep.subr.mxu0 0.0
      %312 = vmatpush2.msra.mxu0 0.0
      %313 = vmatprep.subr.mxu0 0.0
      %314 = vmatpush2.msra.mxu0 0.0
      %315 = vmatprep.subr.mxu0 0.0
      %316 = vmatpush2.msra.mxu0 0.0
      %317 = vmatprep.subr.mxu0 0.0
      %318 = vmatpush2.msra.mxu0 0.0
      %319 = vmatprep.subr.mxu0 0.0
      %320 = vmatpush2.msra.mxu0 0.0
      %321 = vmatprep.subr.mxu0 0.0
      %322 = vmatpush2.msra.mxu0 0.0
      %323 = vmatprep.subr.mxu0 0.0
      %324 = vmatpush2.msra.mxu0 0.0
      %325 = vmatprep.subr.mxu0 0.0
      %326 = vmatpush2.msra.mxu0 0.0
      %327 = vmatprep.subr.mxu0 0.0
      %328 = vmatpush2.msra.mxu0 0.0
      %329 = vmatprep.subr.mxu0 0.0
      %330 = vmatpush2.msra.mxu0 0.0
      %331 = vmatprep.subr.mxu0 0.0
      %332 = vmatpush2.msra.mxu0 0.0
      %333 = vmatprep.subr.mxu0 0.0
      %334 = vmatpush2.msra.mxu0 0.0
      %335 = vmatprep.mubr.f32.mxu0 0.0
      %336 = vmatmul.mubr.f32.gmra.mxu0 %v269
      %v337 = vpop.f32.mrf.mxu0
      %v338 = vadd.f32 0.0, %v337
      %v339 = vpop.f32.mrf.mxu0
      %v340 = vadd.f32 0.0, %v339
      %341 = vdwg.mxu0
      %v342 = vld [vmem:[%s245] sm:$0xff]
      %v345 = vcombine.low %v338, %v340
      %v347 = vmul.f32 %v342, %v345
      %v348 = vld [vmem:[%s3] sm:$0xff]
      %v349 = vld [vmem:[%s3 + $0x8] sm:$0xff]
      %v350 = vld [vmem:[%s3 + $0x10] sm:$0xff]
      %v351 = vld [vmem:[%s3 + $0x18] sm:$0xff]
      %352 = vrot.lane.b32.xlu0 %v262, 112
      %v353 = vpop.permute.xlu0 %352
      %v354 = vsel %vm267, %v353, 0
      %356 = vmatprep.subr.mxu0 0.0
      %357 = vmatpush1.msra.mxu0 0.0
      %358 = vmatprep.subr.mxu0 0.0
      %359 = vmatpush1.msra.mxu0 0.0
      %360 = vmatprep.subr.mxu0 0.0
      %361 = vmatpush1.msra.mxu0 0.0
      %362 = vmatprep.subr.mxu0 0.0
      %363 = vmatpush1.msra.mxu0 0.0
      %364 = vmatprep.subr.mxu0 0.0
      %365 = vmatpush1.msra.mxu0 0.0
      %366 = vmatprep.subr.mxu0 0.0
      %367 = vmatpush1.msra.mxu0 0.0
      %368 = vmatprep.subr.mxu0 0.0
      %369 = vmatpush1.msra.mxu0 0.0
      %370 = vmatprep.subr.mxu0 0.0
      %371 = vmatpush1.msra.mxu0 0.0
      %372 = vmatprep.subr.mxu0 0.0
      %373 = vmatpush1.msra.mxu0 0.0
      %374 = vmatprep.subr.mxu0 0.0
      %375 = vmatpush1.msra.mxu0 0.0
      %376 = vmatprep.subr.mxu0 0.0
      %377 = vmatpush1.msra.mxu0 0.0
      %378 = vmatprep.subr.mxu0 0.0
      %379 = vmatpush1.msra.mxu0 0.0
      %380 = vmatprep.subr.mxu0 0.0
      %381 = vmatpush1.msra.mxu0 0.0
      %382 = vmatprep.subr.mxu0 0.0
      %383 = vmatpush1.msra.mxu0 0.0
      %384 = vmatprep.subr.mxu0 %v351
      %385 = vmatpush1.msra.mxu0 %v350
      %386 = vmatprep.subr.mxu0 %v349
      %387 = vmatpush1.msra.mxu0 %v348
      %388 = vmatprep.subr.mxu0 0.0
      %389 = vmatpush2.msra.mxu0 0.0
      %390 = vmatprep.subr.mxu0 0.0
      %391 = vmatpush2.msra.mxu0 0.0
      %392 = vmatprep.subr.mxu0 0.0
      %393 = vmatpush2.msra.mxu0 0.0
      %394 = vmatprep.subr.mxu0 0.0
      %395 = vmatpush2.msra.mxu0 0.0
      %396 = vmatprep.subr.mxu0 0.0
      %397 = vmatpush2.msra.mxu0 0.0
      %398 = vmatprep.subr.mxu0 0.0
      %399 = vmatpush2.msra.mxu0 0.0
      %400 = vmatprep.subr.mxu0 0.0
      %401 = vmatpush2.msra.mxu0 0.0
      %402 = vmatprep.subr.mxu0 0.0
      %403 = vmatpush2.msra.mxu0 0.0
      %404 = vmatprep.subr.mxu0 0.0
      %405 = vmatpush2.msra.mxu0 0.0
      %406 = vmatprep.subr.mxu0 0.0
      %407 = vmatpush2.msra.mxu0 0.0
      %408 = vmatprep.subr.mxu0 0.0
      %409 = vmatpush2.msra.mxu0 0.0
      %410 = vmatprep.subr.mxu0 0.0
      %411 = vmatpush2.msra.mxu0 0.0
      %412 = vmatprep.subr.mxu0 0.0
      %413 = vmatpush2.msra.mxu0 0.0
      %414 = vmatprep.subr.mxu0 0.0
      %415 = vmatpush2.msra.mxu0 0.0
      %416 = vmatprep.subr.mxu0 0.0
      %417 = vmatpush2.msra.mxu0 0.0
      %418 = vmatprep.subr.mxu0 0.0
      %419 = vmatpush2.msra.mxu0 0.0
      %420 = vmatprep.mubr.f32.mxu0 0.0
      %421 = vmatmul.mubr.f32.gmra.mxu0 %v354
      %v422 = vpop.f32.mrf.mxu0
      %v423 = vadd.f32 0.0, %v422
      %v424 = vpop.f32.mrf.mxu0
      %v425 = vadd.f32 0.0, %v424
      %426 = vdwg.mxu0
      %v429 = vcombine.low %v423, %v425
      %v431 = vmul.f32 %v347, %v429
      %432 = vst [vmem:[%s261] sm:$0xff] %v431
      %p433 = scmp.lt.s32.totalorder %s19, 1
      %s434 = scalar_select %p433, %s19, 1
      %p435 = scmp.lt.s32.totalorder %s20, 0
      %s436 = scalar_select %p435, %s20, 0
      %s437 = smul.addr %s436, 2
      %s438 = smul.addr %s434, 2
      %s439 = sadd.s32 %s437, %s438
      %s440 = smul.addr %s439, 4
      %s441 = scalar_lea.vmem %s4, %s440
      // Predicated region
      $region37: #{ca_forward.5} parent=35 // pred_check
        %p442 = pneg %p145
      $region38: #{ca_forward.5} parent=35 // pred_check_branch
        %444 = sbr.rel (%p442) target = $region40
      $region39: #{ca_forward.5} parent=35 // pred_region
        _
      $region40: #{ca_forward.5} parent=35 // pred_fallthru
        _
    $region36: #{ca_forward.5} parent=5 // pred_fallthru
      _
    %p445 = scmp.le.s32.totalorder 2, %s10
    // Predicated region
    $region41: #{ca_forward.5} parent=5 // pred_check
      %p446 = pneg %p445
    $region42: #{ca_forward.5} parent=5 // pred_check_branch
      %448 = sbr.rel (%p446) target = $region44
    $region43: #{ca_forward.5} parent=5 // pred_region
      %s449 = ssub.s32 %s10, 2
      // Predicated region
      $region45: #{ca_forward.5} parent=43 // pred_check
        %p450 = pneg %p151
      $region46: #{ca_forward.5} parent=43 // pred_check_branch
        %452 = sbr.rel (%p450) target = $region48
      $region47: #{ca_forward.5} parent=43 // pred_region
        %p453 = scmp.lt.s32.totalorder %s21, 1
        %s454 = scalar_select %p453, %s21, 1
        %p455 = scmp.lt.s32.totalorder %s22, 0
        %s456 = scalar_select %p455, %s22, 0
        %s457 = smul.addr %s456, 2
        %s458 = smul.addr %s454, 2
        %s459 = sadd.s32 %s457, %s458
        %s460 = smul.addr %s459, 4
        %s461 = scalar_lea.vmem %s4, %s460
      $region48: #{ca_forward.5} parent=43 // pred_fallthru
        _
    $region44: #{ca_forward.5} parent=5 // pred_fallthru
      _
  $region6: #{ca_forward.5} parent=0 // loop_footer
    %s14 = sadd.s32 1, %s10
  $region7: #{ca_forward.5} parent=0 // loop_footer_branch
    %9 = sbr.rel target = $region3
  $region8: #{ca_forward.5} parent=0 // loop_exit
    _

// kernel: ca_forward.4
$region0: #{ca_forward.4}
  #allocation0 [shape = 'u32[]', space=smem, size = 0x4, offset = 0x4, fixed_abs, tag = 'smem constant byte address 0x4 - core index']
  #allocation1 [shape = 'u32[144,128]{1,0:T(1,128)}', space=vmem, size = 0x12000, scoped, tag = 'internal scratch']
  %s0 = inlined_call_operand.vmem [shape: f32[2,4,32], index: 0, kind: input, shape index: {}]
  %s1 = inlined_call_operand.vmem [shape: f32[8,4], index: 1, kind: input, shape index: {}]
  %s2 = inlined_call_operand.vmem [shape: f32[8,1], index: 2, kind: input, shape index: {}]
  %s3 = inlined_call_operand.vmem [shape: f32[4,8], index: 3, kind: input, shape index: {}]
  %s4 = inlined_call_operand.vmem [shape: f32[4,1], index: 4, kind: input, shape index: {}]
  %s5 = inlined_call_operand.vmem [shape: f32[4,8], index: 5, kind: input, shape index: {}]
  %s6 = inlined_call_operand.vmem [shape: f32[4,1], index: 6, kind: input, shape index: {}]
  %s7 = inlined_call_operand.vmem [shape: f32[2,4,32], index: 7, kind: output, shape index: {}]
  %s8 = sld [smem:[#allocation0]]
  $region61: #{ca_forward.4} parent=0
    _
  %s10 = ssub.s32 1, %s8
  %s11 = scalar_select 0, %s10, %s8
  loop: start=0, step=1, limit=4
  $region2: #{ca_forward.4} parent=0 // loop_pre_header
    _
  $region3: #{ca_forward.4} parent=0 // loop_header
    %s13 = sphi 0, %s17
    %p14 = scmp.ge.s32.totalorder %s13, 4
    %s23 = sphi 0, %s25
    %s26 = sphi 0, %s23
    %s27 = sphi 0, %s26
    %s43 = sphi 0, %s27
    %s47 = sphi 0, %s47
    %s49 = sphi 0, %s47
    %s50 = sphi 0, %s49
    %s64 = sphi 0, %s50
    %s68 = sphi 0, %s68
    %s70 = sphi 0, %s68
    %s71 = sphi 0, %s70
    %s85 = sphi 0, %s71
    %s89 = sphi 0, %s89
    %s91 = sphi 0, %s89
    %s92 = sphi 0, %s91
    %s106 = sphi 0, %s92
    %s110 = sphi 0, %s110
    %s112 = sphi 0, %s110
    %s113 = sphi 0, %s112
    %s127 = sphi 0, %s113
    %s131 = sphi 0, %s131
    %s133 = sphi 0, %s131
    %s134 = sphi 0, %s133
    %s148 = sphi 0, %s134
    %s152 = sphi 0, %s152
    %s154 = sphi 0, %s152
    %s155 = sphi 0, %s154
    %s169 = sphi 0, %s155
    %s175 = sphi 0, %s177
    %s178 = sphi 0, %s175
    %s179 = sphi 0, %s178
    %s195 = sphi 0, %s179
  $region4: #{ca_forward.4} parent=0 // loop_header_branch
    %16 = sbr.rel (%p14) target = $region8
  $region5: #{ca_forward.4} parent=0 // loop_body
    %s18 = ssub.s32 %s13, 1
    %s19 = ssub.s32 %s13, 2
    %s20 = sadd.s32 %s13, 1
    %s21 = ssub.s32 %s13, %s20
    %p22 = scmp.eq.s32.totalorder %s21, 0
    %s24 = sadd.s32 %s23, 1
    %s25 = scalar_select %p22, %s23, %s24
    %p28 = pneg %p22
    %p29 = scmp.eq.s32.totalorder %s13, 1
    %p30 = por %p28, %p29
    %p31 = scmp.ne.s32.totalorder %s23, %s26
    %p32 = scmp.eq.s32.totalorder %s13, 0
    %p33 = por %p31, %p32
    %p34 = scmp.ne.s32.totalorder %s23, %s26
    %p35 = scmp.eq.s32.totalorder %s18, 1
    %p36 = por %p34, %p35
    %p37 = scmp.ne.s32.totalorder %s26, %s27
    %p38 = scmp.eq.s32.totalorder %s18, 0
    %p39 = por %p37, %p38
    %p40 = scmp.ne.s32.totalorder %s26, %s27
    %p41 = scmp.eq.s32.totalorder %s19, 1
    %p42 = por %p40, %p41
    %p44 = scmp.ne.s32.totalorder %s27, %s43
    %p45 = scmp.eq.s32.totalorder %s19, 0
    %p46 = por %p44, %p45
    %s48 = sadd.s32 %s47, 1
    %p51 = scmp.eq.s32.totalorder %s13, 1
    %p52 = scmp.ne.s32.totalorder %s47, %s49
    %p53 = scmp.eq.s32.totalorder %s13, 0
    %p54 = por %p52, %p53
    %p55 = scmp.ne.s32.totalorder %s47, %s49
    %p56 = scmp.eq.s32.totalorder %s18, 1
    %p57 = por %p55, %p56
    %p58 = scmp.ne.s32.totalorder %s49, %s50
    %p59 = scmp.eq.s32.totalorder %s18, 0
    %p60 = por %p58, %p59
    %p61 = scmp.ne.s32.totalorder %s49, %s50
    %p62 = scmp.eq.s32.totalorder %s19, 1
    %p63 = por %p61, %p62
    %p65 = scmp.ne.s32.totalorder %s50, %s64
    %p66 = scmp.eq.s32.totalorder %s19, 0
    %p67 = por %p65, %p66
    %s69 = sadd.s32 %s68, 1
    %p72 = scmp.eq.s32.totalorder %s13, 1
    %p73 = scmp.ne.s32.totalorder %s68, %s70
    %p74 = scmp.eq.s32.totalorder %s13, 0
    %p75 = por %p73, %p74
    %p76 = scmp.ne.s32.totalorder %s68, %s70
    %p77 = scmp.eq.s32.totalorder %s18, 1
    %p78 = por %p76, %p77
    %p79 = scmp.ne.s32.totalorder %s70, %s71
    %p80 = scmp.eq.s32.totalorder %s18, 0
    %p81 = por %p79, %p80
    %p82 = scmp.ne.s32.totalorder %s70, %s71
    %p83 = scmp.eq.s32.totalorder %s19, 1
    %p84 = por %p82, %p83
    %p86 = scmp.ne.s32.totalorder %s71, %s85
    %p87 = scmp.eq.s32.totalorder %s19, 0
    %p88 = por %p86, %p87
    %s90 = sadd.s32 %s89, 1
    %p93 = scmp.eq.s32.totalorder %s13, 1
    %p94 = scmp.ne.s32.totalorder %s89, %s91
    %p95 = scmp.eq.s32.totalorder %s13, 0
    %p96 = por %p94, %p95
    %p97 = scmp.ne.s32.totalorder %s89, %s91
    %p98 = scmp.eq.s32.totalorder %s18, 1
    %p99 = por %p97, %p98
    %p100 = scmp.ne.s32.totalorder %s91, %s92
    %p101 = scmp.eq.s32.totalorder %s18, 0
    %p102 = por %p100, %p101
    %p103 = scmp.ne.s32.totalorder %s91, %s92
    %p104 = scmp.eq.s32.totalorder %s19, 1
    %p105 = por %p103, %p104
    %p107 = scmp.ne.s32.totalorder %s92, %s106
    %p108 = scmp.eq.s32.totalorder %s19, 0
    %p109 = por %p107, %p108
    %s111 = sadd.s32 %s110, 1
    %p114 = scmp.eq.s32.totalorder %s13, 1
    %p115 = scmp.ne.s32.totalorder %s110, %s112
    %p116 = scmp.eq.s32.totalorder %s13, 0
    %p117 = por %p115, %p116
    %p118 = scmp.ne.s32.totalorder %s110, %s112
    %p119 = scmp.eq.s32.totalorder %s18, 1
    %p120 = por %p118, %p119
    %p121 = scmp.ne.s32.totalorder %s112, %s113
    %p122 = scmp.eq.s32.totalorder %s18, 0
    %p123 = por %p121, %p122
    %p124 = scmp.ne.s32.totalorder %s112, %s113
    %p125 = scmp.eq.s32.totalorder %s19, 1
    %p126 = por %p124, %p125
    %p128 = scmp.ne.s32.totalorder %s113, %s127
    %p129 = scmp.eq.s32.totalorder %s19, 0
    %p130 = por %p128, %p129
    %s132 = sadd.s32 %s131, 1
    %p135 = scmp.eq.s32.totalorder %s13, 1
    %p136 = scmp.ne.s32.totalorder %s131, %s133
    %p137 = scmp.eq.s32.totalorder %s13, 0
    %p138 = por %p136, %p137
    %p139 = scmp.ne.s32.totalorder %s131, %s133
    %p140 = scmp.eq.s32.totalorder %s18, 1
    %p141 = por %p139, %p140
    %p142 = scmp.ne.s32.totalorder %s133, %s134
    %p143 = scmp.eq.s32.totalorder %s18, 0
    %p144 = por %p142, %p143
    %p145 = scmp.ne.s32.totalorder %s133, %s134
    %p146 = scmp.eq.s32.totalorder %s19, 1
    %p147 = por %p145, %p146
    %p149 = scmp.ne.s32.totalorder %s134, %s148
    %p150 = scmp.eq.s32.totalorder %s19, 0
    %p151 = por %p149, %p150
    %s153 = sadd.s32 %s152, 1
    %p156 = scmp.eq.s32.totalorder %s13, 1
    %p157 = scmp.ne.s32.totalorder %s152, %s154
    %p158 = scmp.eq.s32.totalorder %s13, 0
    %p159 = por %p157, %p158
    %p160 = scmp.ne.s32.totalorder %s152, %s154
    %p161 = scmp.eq.s32.totalorder %s18, 1
    %p162 = por %p160, %p161
    %p163 = scmp.ne.s32.totalorder %s154, %s155
    %p164 = scmp.eq.s32.totalorder %s18, 0
    %p165 = por %p163, %p164
    %p166 = scmp.ne.s32.totalorder %s154, %s155
    %p167 = scmp.eq.s32.totalorder %s19, 1
    %p168 = por %p166, %p167
    %p170 = scmp.ne.s32.totalorder %s155, %s169
    %p171 = scmp.eq.s32.totalorder %s19, 0
    %p172 = por %p170, %p171
    %s173 = ssub.s32 %s13, %s20
    %p174 = scmp.eq.s32.totalorder %s173, 0
    %s176 = sadd.s32 %s175, 1
    %s177 = scalar_select %p174, %s175, %s176
    %p180 = pneg %p174
    %p181 = scmp.eq.s32.totalorder %s13, 1
    %p182 = por %p180, %p181
    %p183 = scmp.ne.s32.totalorder %s175, %s178
    %p184 = scmp.eq.s32.totalorder %s13, 0
    %p185 = por %p183, %p184
    %p186 = scmp.ne.s32.totalorder %s175, %s178
    %p187 = scmp.eq.s32.totalorder %s18, 1
    %p188 = por %p186, %p187
    %p189 = scmp.ne.s32.totalorder %s178, %s179
    %p190 = scmp.eq.s32.totalorder %s18, 0
    %p191 = por %p189, %p190
    %p192 = scmp.ne.s32.totalorder %s178, %s179
    %p193 = scmp.eq.s32.totalorder %s19, 1
    %p194 = por %p192, %p193
    %p196 = scmp.ne.s32.totalorder %s179, %s195
    %p197 = scmp.eq.s32.totalorder %s19, 0
    %p198 = por %p196, %p197
    %p199 = scmp.le.s32.totalorder 1, %s13
    %p200 = scmp.lt.s32.totalorder %s13, 3
    %p201 = pnand %p199, %p200
    %p202 = pneg %p201
    // Predicated region
    $region9: #{ca_forward.4} parent=5 // pred_check
      _
    $region10: #{ca_forward.4} parent=5 // pred_check_branch
      %204 = sbr.rel (%p201) target = $region12
    $region11: #{ca_forward.4} parent=5 // pred_region
      %s205 = ssub.s32 %s13, 1
      // Predicated region
      $region13: #{ca_forward.4} parent=11 // pred_check
        %p206 = pneg %p60
      $region14: #{ca_forward.4} parent=11 // pred_check_branch
        %208 = sbr.rel (%p206) target = $region16
      $region15: #{ca_forward.4} parent=11 // pred_region
        _
      $region16: #{ca_forward.4} parent=11 // pred_fallthru
        _
      // Predicated region
      $region17: #{ca_forward.4} parent=11 // pred_check
        %p209 = pneg %p81
      $region18: #{ca_forward.4} parent=11 // pred_check_branch
        %211 = sbr.rel (%p209) target = $region20
      $region19: #{ca_forward.4} parent=11 // pred_region
        _
      $region20: #{ca_forward.4} parent=11 // pred_fallthru
        _
      // Predicated region
      $region21: #{ca_forward.4} parent=11 // pred_check
        %p212 = pneg %p102
      $region22: #{ca_forward.4} parent=11 // pred_check_branch
        %214 = sbr.rel (%p212) target = $region24
      $region23: #{ca_forward.4} parent=11 // pred_region
        _
      $region24: #{ca_forward.4} parent=11 // pred_fallthru
        _
      // Predicated region
      $region25: #{ca_forward.4} parent=11 // pred_check
        %p215 = pneg %p123
      $region26: #{ca_forward.4} parent=11 // pred_check_branch
        %217 = sbr.rel (%p215) target = $region28
      $region27: #{ca_forward.4} parent=11 // pred_region
        _
      $region28: #{ca_forward.4} parent=11 // pred_fallthru
        _
      // Predicated region
      $region29: #{ca_forward.4} parent=11 // pred_check
        %p218 = pneg %p144
      $region30: #{ca_forward.4} parent=11 // pred_check_branch
        %220 = sbr.rel (%p218) target = $region32
      $region31: #{ca_forward.4} parent=11 // pred_region
        _
      $region32: #{ca_forward.4} parent=11 // pred_fallthru
        _
      // Predicated region
      $region33: #{ca_forward.4} parent=11 // pred_check
        %p221 = pneg %p165
      $region34: #{ca_forward.4} parent=11 // pred_check_branch
        %223 = sbr.rel (%p221) target = $region36
      $region35: #{ca_forward.4} parent=11 // pred_region
        _
      $region36: #{ca_forward.4} parent=11 // pred_fallthru
        _
    $region12: #{ca_forward.4} parent=5 // pred_fallthru
      _
    %p224 = scmp.lt.s32.totalorder %s13, 2
    // Predicated region
    $region37: #{ca_forward.4} parent=5 // pred_check
      %p225 = pneg %p224
    $region38: #{ca_forward.4} parent=5 // pred_check_branch
      %227 = sbr.rel (%p225) target = $region40
    $region39: #{ca_forward.4} parent=5 // pred_region
      // Predicated region
      $region41: #{ca_forward.4} parent=39 // pred_check
        %p228 = pneg %p33
      $region42: #{ca_forward.4} parent=39 // pred_check_branch
        %230 = sbr.rel (%p228) target = $region44
      $region43: #{ca_forward.4} parent=39 // pred_region
        %p231 = scmp.lt.s32.totalorder %s13, 1
        %s232 = scalar_select %p231, %s13, 1
        %s233 = smul.addr %s232, 4
        %s234 = scalar_lea.vmem %s0, %s233
      $region44: #{ca_forward.4} parent=39 // pred_fallthru
        _
    $region40: #{ca_forward.4} parent=5 // pred_fallthru
      _
    %p235 = scmp.le.s32.totalorder 1, %s13
    %p236 = scmp.lt.s32.totalorder %s13, 3
    %p237 = pnand %p235, %p236
    %p238 = pneg %p237
    // Predicated region
    $region45: #{ca_forward.4} parent=5 // pred_check
      _
    $region46: #{ca_forward.4} parent=5 // pred_check_branch
      %240 = sbr.rel (%p237) target = $region48
    $region47: #{ca_forward.4} parent=5 // pred_region
      %s241 = ssub.s32 %s13, 1
      %p242 = scmp.lt.s32.totalorder %s18, 1
      %s243 = scalar_select %p242, %s18, 1
      %s244 = smul.addr %s243, 4
      %s245 = scalar_lea.vmem %s0, %s244
      %p246 = pneg %p39
      %p247 = pneg %p36
      %p248 = pneg %p60
      %p249 = pneg %p57
      %p250 = pneg %p81
      %p251 = pneg %p78
      %p252 = pneg %p102
      %p253 = pneg %p99
      %p254 = pneg %p123
      %p255 = pneg %p120
      %p256 = pneg %p144
      %p257 = pneg %p141
      %p258 = pneg %p165
      %p259 = pneg %p162
      %p260 = pneg %p191
      %p261 = pneg %p188
      %p262 = scmp.lt.s32.totalorder %s18, 1
      %s263 = scalar_select %p262, %s18, 1
      %s264 = smul.addr %s263, 4
      %s265 = scalar_lea.vmem %s7, %s264
      %p266 = scmp.lt.s32.totalorder %s18, 1
      %s267 = scalar_select %p266, %s18, 1
      %s268 = smul.addr %s267, 4
      %s269 = scalar_lea.vmem %s0, %s268
      %p270 = scmp.lt.s32.totalorder %s18, 1
      %s271 = scalar_select %p270, %s18, 1
      %s272 = smul.addr %s271, 4
      %s273 = scalar_lea.vmem %s7, %s272
      %v274 = vld [vmem:[%s269] sm:$0xf]
      %v275 = vld [vmem:[%s1] sm:$0xff]
      %v276 = vld [vmem:[%s2] sm:$0xff]
      %278 = vset.pattern.permute.xlu0 0
      %279 = vperm.xlu0 %278, %v276
      %v280 = vpop.permute.xlu0 %279
      %vm282 = vcmask 31744
      %v284 = vsel %vm282, %v275, 0
      %vm286 = vcmask 1043456
      %v288 = vsel %vm286, %v274, 0
      %290 = vmatprep.subr.mxu0 0.0
      %291 = vmatpush1.msra.mxu0 0.0
      %292 = vmatprep.subr.mxu0 0.0
      %293 = vmatpush1.msra.mxu0 0.0
      %294 = vmatprep.subr.mxu0 0.0
      %295 = vmatpush1.msra.mxu0 0.0
      %296 = vmatprep.subr.mxu0 0.0
      %297 = vmatpush1.msra.mxu0 0.0
      %298 = vmatprep.subr.mxu0 0.0
      %299 = vmatpush1.msra.mxu0 0.0
      %300 = vmatprep.subr.mxu0 0.0
      %301 = vmatpush1.msra.mxu0 0.0
      %302 = vmatprep.subr.mxu0 0.0
      %303 = vmatpush1.msra.mxu0 0.0
      %304 = vmatprep.subr.mxu0 0.0
      %305 = vmatpush1.msra.mxu0 0.0
      %306 = vmatprep.subr.mxu0 0.0
      %307 = vmatpush1.msra.mxu0 0.0
      %308 = vmatprep.subr.mxu0 0.0
      %309 = vmatpush1.msra.mxu0 0.0
      %310 = vmatprep.subr.mxu0 0.0
      %311 = vmatpush1.msra.mxu0 0.0
      %312 = vmatprep.subr.mxu0 0.0
      %313 = vmatpush1.msra.mxu0 0.0
      %314 = vmatprep.subr.mxu0 0.0
      %315 = vmatpush1.msra.mxu0 0.0
      %316 = vmatprep.subr.mxu0 0.0
      %317 = vmatpush1.msra.mxu0 0.0
      %318 = vmatprep.subr.mxu0 0.0
      %319 = vmatpush1.msra.mxu0 0.0
      %320 = vmatprep.subr.mxu0 0.0
      %321 = vmatpush1.msra.mxu0 %v288
      %322 = vmatprep.subr.mxu0 0.0
      %323 = vmatpush2.msra.mxu0 0.0
      %324 = vmatprep.subr.mxu0 0.0
      %325 = vmatpush2.msra.mxu0 0.0
      %326 = vmatprep.subr.mxu0 0.0
      %327 = vmatpush2.msra.mxu0 0.0
      %328 = vmatprep.subr.mxu0 0.0
      %329 = vmatpush2.msra.mxu0 0.0
      %330 = vmatprep.subr.mxu0 0.0
      %331 = vmatpush2.msra.mxu0 0.0
      %332 = vmatprep.subr.mxu0 0.0
      %333 = vmatpush2.msra.mxu0 0.0
      %334 = vmatprep.subr.mxu0 0.0
      %335 = vmatpush2.msra.mxu0 0.0
      %336 = vmatprep.subr.mxu0 0.0
      %337 = vmatpush2.msra.mxu0 0.0
      %338 = vmatprep.subr.mxu0 0.0
      %339 = vmatpush2.msra.mxu0 0.0
      %340 = vmatprep.subr.mxu0 0.0
      %341 = vmatpush2.msra.mxu0 0.0
      %342 = vmatprep.subr.mxu0 0.0
      %343 = vmatpush2.msra.mxu0 0.0
      %344 = vmatprep.subr.mxu0 0.0
      %345 = vmatpush2.msra.mxu0 0.0
      %346 = vmatprep.subr.mxu0 0.0
      %347 = vmatpush2.msra.mxu0 0.0
      %348 = vmatprep.subr.mxu0 0.0
      %349 = vmatpush2.msra.mxu0 0.0
      %350 = vmatprep.subr.mxu0 0.0
      %351 = vmatpush2.msra.mxu0 0.0
      %352 = vmatprep.subr.mxu0 0.0
      %353 = vmatpush2.msra.mxu0 0.0
      %354 = vmatprep.mubr.f32.mxu0 0.0
      %355 = vmatmul.mubr.f32.gmra.mxu0 %v284
      %v356 = vpop.f32.mrf.mxu0
      %v357 = vadd.f32 %v280, %v356
      %v358 = vpop.f32.mrf.mxu0
      %359 = vdwg.mxu0
      %v360 = vadd.f32 %v357, 3.0
      %v361 = vmax.f32 %v360, 0.0
      %v362 = vmin.f32 %v361, 6.0
      %v363 = vmul.f32 %v357, %v362
      %v364 = vmul.f32 %v363, 0.16666667
      %v365 = vld [vmem:[%s3] sm:$0xf]
      %v366 = vld [vmem:[%s4] sm:$0xf]
      %368 = vset.pattern.permute.xlu0 0
      %369 = vperm.xlu0 %368, %v366
      %v370 = vpop.permute.xlu0 %369
      %vm372 = vcmask 64512
      %v374 = vsel %vm372, %v365, 0
      %376 = vmatprep.subr.mxu0 0.0
      %377 = vmatpush1.msra.mxu0 0.0
      %378 = vmatprep.subr.mxu0 0.0
      %379 = vmatpush1.msra.mxu0 0.0
      %380 = vmatprep.subr.mxu0 0.0
      %381 = vmatpush1.msra.mxu0 0.0
      %382 = vmatprep.subr.mxu0 0.0
      %383 = vmatpush1.msra.mxu0 0.0
      %384 = vmatprep.subr.mxu0 0.0
      %385 = vmatpush1.msra.mxu0 0.0
      %386 = vmatprep.subr.mxu0 0.0
      %387 = vmatpush1.msra.mxu0 0.0
      %388 = vmatprep.subr.mxu0 0.0
      %389 = vmatpush1.msra.mxu0 0.0
      %390 = vmatprep.subr.mxu0 0.0
      %391 = vmatpush1.msra.mxu0 0.0
      %392 = vmatprep.subr.mxu0 0.0
      %393 = vmatpush1.msra.mxu0 0.0
      %394 = vmatprep.subr.mxu0 0.0
      %395 = vmatpush1.msra.mxu0 0.0
      %396 = vmatprep.subr.mxu0 0.0
      %397 = vmatpush1.msra.mxu0 0.0
      %398 = vmatprep.subr.mxu0 0.0
      %399 = vmatpush1.msra.mxu0 0.0
      %400 = vmatprep.subr.mxu0 0.0
      %401 = vmatpush1.msra.mxu0 0.0
      %402 = vmatprep.subr.mxu0 0.0
      %403 = vmatpush1.msra.mxu0 0.0
      %404 = vmatprep.subr.mxu0 0.0
      %405 = vmatpush1.msra.mxu0 0.0
      %406 = vmatprep.subr.mxu0 0.0
      %407 = vmatpush1.msra.mxu0 %v364
      %408 = vmatprep.subr.mxu0 0.0
      %409 = vmatpush2.msra.mxu0 0.0
      %410 = vmatprep.subr.mxu0 0.0
      %411 = vmatpush2.msra.mxu0 0.0
      %412 = vmatprep.subr.mxu0 0.0
      %413 = vmatpush2.msra.mxu0 0.0
      %414 = vmatprep.subr.mxu0 0.0
      %415 = vmatpush2.msra.mxu0 0.0
      %416 = vmatprep.subr.mxu0 0.0
      %417 = vmatpush2.msra.mxu0 0.0
      %418 = vmatprep.subr.mxu0 0.0
      %419 = vmatpush2.msra.mxu0 0.0
      %420 = vmatprep.subr.mxu0 0.0
      %421 = vmatpush2.msra.mxu0 0.0
      %422 = vmatprep.subr.mxu0 0.0
      %423 = vmatpush2.msra.mxu0 0.0
      %424 = vmatprep.subr.mxu0 0.0
      %425 = vmatpush2.msra.mxu0 0.0
      %426 = vmatprep.subr.mxu0 0.0
      %427 = vmatpush2.msra.mxu0 0.0
      %428 = vmatprep.subr.mxu0 0.0
      %429 = vmatpush2.msra.mxu0 0.0
      %430 = vmatprep.subr.mxu0 0.0
      %431 = vmatpush2.msra.mxu0 0.0
      %432 = vmatprep.subr.mxu0 0.0
      %433 = vmatpush2.msra.mxu0 0.0
      %434 = vmatprep.subr.mxu0 0.0
      %435 = vmatpush2.msra.mxu0 0.0
      %436 = vmatprep.subr.mxu0 0.0
      %437 = vmatpush2.msra.mxu0 0.0
      %438 = vmatprep.subr.mxu0 0.0
      %439 = vmatpush2.msra.mxu0 0.0
      %440 = vmatprep.mubr.f32.mxu0 0.0
      %441 = vmatmul.mubr.f32.gmra.mxu0 %v374
      %v442 = vpop.f32.mrf.mxu0
      %v443 = vadd.f32 %v370, %v442
      %v444 = vpop.f32.mrf.mxu0
      %445 = vdwg.mxu0
      %v446 = vxor.u32 %v443, 2147483648
      %v447 = vmul.f32 %v446, 1.442695
      %v448 = vpow.pop %v447
      %v449 = vadd.f32 %v448, 1.0
      %v450 = vrcp.pop %v449
      %v451 = vmul.f32 1.0, %v450
      %v452 = vld [vmem:[%s5] sm:$0xf]
      %v453 = vld [vmem:[%s6] sm:$0xf]
      %455 = vset.pattern.permute.xlu0 0
      %456 = vperm.xlu0 %455, %v453
      %v457 = vpop.permute.xlu0 %456
      %v460 = vsel %vm372, %v452, 0
      %462 = vmatprep.subr.mxu0 0.0
      %463 = vmatpush1.msra.mxu0 0.0
      %464 = vmatprep.subr.mxu0 0.0
      %465 = vmatpush1.msra.mxu0 0.0
      %466 = vmatprep.subr.mxu0 0.0
      %467 = vmatpush1.msra.mxu0 0.0
      %468 = vmatprep.subr.mxu0 0.0
      %469 = vmatpush1.msra.mxu0 0.0
      %470 = vmatprep.subr.mxu0 0.0
      %471 = vmatpush1.msra.mxu0 0.0
      %472 = vmatprep.subr.mxu0 0.0
      %473 = vmatpush1.msra.mxu0 0.0
      %474 = vmatprep.subr.mxu0 0.0
      %475 = vmatpush1.msra.mxu0 0.0
      %476 = vmatprep.subr.mxu0 0.0
      %477 = vmatpush1.msra.mxu0 0.0
      %478 = vmatprep.subr.mxu0 0.0
      %479 = vmatpush1.msra.mxu0 0.0
      %480 = vmatprep.subr.mxu0 0.0
      %481 = vmatpush1.msra.mxu0 0.0
      %482 = vmatprep.subr.mxu0 0.0
      %483 = vmatpush1.msra.mxu0 0.0
      %484 = vmatprep.subr.mxu0 0.0
      %485 = vmatpush1.msra.mxu0 0.0
      %486 = vmatprep.subr.mxu0 0.0
      %487 = vmatpush1.msra.mxu0 0.0
      %488 = vmatprep.subr.mxu0 0.0
      %489 = vmatpush1.msra.mxu0 0.0
      %490 = vmatprep.subr.mxu0 0.0
      %491 = vmatpush1.msra.mxu0 0.0
      %492 = vmatprep.subr.mxu0 0.0
      %493 = vmatpush1.msra.mxu0 %v364
      %494 = vmatprep.subr.mxu0 0.0
      %495 = vmatpush2.msra.mxu0 0.0
      %496 = vmatprep.subr.mxu0 0.0
      %497 = vmatpush2.msra.mxu0 0.0
      %498 = vmatprep.subr.mxu0 0.0
      %499 = vmatpush2.msra.mxu0 0.0
      %500 = vmatprep.subr.mxu0 0.0
      %501 = vmatpush2.msra.mxu0 0.0
      %502 = vmatprep.subr.mxu0 0.0
      %503 = vmatpush2.msra.mxu0 0.0
      %504 = vmatprep.subr.mxu0 0.0
      %505 = vmatpush2.msra.mxu0 0.0
      %506 = vmatprep.subr.mxu0 0.0
      %507 = vmatpush2.msra.mxu0 0.0
      %508 = vmatprep.subr.mxu0 0.0
      %509 = vmatpush2.msra.mxu0 0.0
      %510 = vmatprep.subr.mxu0 0.0
      %511 = vmatpush2.msra.mxu0 0.0
      %512 = vmatprep.subr.mxu0 0.0
      %513 = vmatpush2.msra.mxu0 0.0
      %514 = vmatprep.subr.mxu0 0.0
      %515 = vmatpush2.msra.mxu0 0.0
      %516 = vmatprep.subr.mxu0 0.0
      %517 = vmatpush2.msra.mxu0 0.0
      %518 = vmatprep.subr.mxu0 0.0
      %519 = vmatpush2.msra.mxu0 0.0
      %520 = vmatprep.subr.mxu0 0.0
      %521 = vmatpush2.msra.mxu0 0.0
      %522 = vmatprep.subr.mxu0 0.0
      %523 = vmatpush2.msra.mxu0 0.0
      %524 = vmatprep.subr.mxu0 0.0
      %525 = vmatpush2.msra.mxu0 0.0
      %526 = vmatprep.mubr.f32.mxu0 0.0
      %527 = vmatmul.mubr.f32.gmra.mxu0 %v460
      %v528 = vpop.f32.mrf.mxu0
      %v529 = vadd.f32 %v457, %v528
      %v530 = vpop.f32.mrf.mxu0
      %531 = vdwg.mxu0
      %v532 = vxor.u32 %v529, 2147483648
      %v533 = vmul.f32 %v532, 1.442695
      %v534 = vpow.pop %v533
      %v535 = vadd.f32 %v534, 1.0
      %v536 = vrcp.pop %v535
      %v537 = vmul.f32 1.0, %v536
      %v538 = vlaneseq
      %v539 = vand.u32 %v538, 127
      %vm540 = vcmp.lt.s32.totalorder %v539, 16
      %v541 = vsel %vm540, %v451, %v537
      %vm542 = vcmask 257024
      %543 = vst.msk [vmem:[%s273] sm:$0xf] %vm542, %v541
      %p544 = scmp.lt.s32.totalorder %s18, 1
      %s545 = scalar_select %p544, %s18, 1
      %s546 = smul.addr %s545, 4
      %s547 = scalar_lea.vmem %s7, %s546
      // Predicated region
      $region49: #{ca_forward.4} parent=47 // pred_check
        %p548 = pneg %p188
      $region50: #{ca_forward.4} parent=47 // pred_check_branch
        %550 = sbr.rel (%p548) target = $region52
      $region51: #{ca_forward.4} parent=47 // pred_region
        _
      $region52: #{ca_forward.4} parent=47 // pred_fallthru
        _
    $region48: #{ca_forward.4} parent=5 // pred_fallthru
      _
    %p551 = scmp.le.s32.totalorder 2, %s13
    // Predicated region
    $region53: #{ca_forward.4} parent=5 // pred_check
      %p552 = pneg %p551
    $region54: #{ca_forward.4} parent=5 // pred_check_branch
      %554 = sbr.rel (%p552) target = $region56
    $region55: #{ca_forward.4} parent=5 // pred_region
      %s555 = ssub.s32 %s13, 2
      // Predicated region
      $region57: #{ca_forward.4} parent=55 // pred_check
        %p556 = pneg %p194
      $region58: #{ca_forward.4} parent=55 // pred_check_branch
        %558 = sbr.rel (%p556) target = $region60
      $region59: #{ca_forward.4} parent=55 // pred_region
        %p559 = scmp.lt.s32.totalorder %s19, 1
        %s560 = scalar_select %p559, %s19, 1
        %s561 = smul.addr %s560, 4
        %s562 = scalar_lea.vmem %s7, %s561
      $region60: #{ca_forward.4} parent=55 // pred_fallthru
        _
    $region56: #{ca_forward.4} parent=5 // pred_fallthru
      _
  $region6: #{ca_forward.4} parent=0 // loop_footer
    %s17 = sadd.s32 1, %s13
  $region7: #{ca_forward.4} parent=0 // loop_footer_branch
    %12 = sbr.rel target = $region3
  $region8: #{ca_forward.4} parent=0 // loop_exit
    _

// kernel: ca_forward.3
$region0: #{ca_forward.3}
  #allocation0 [shape = 'u32[]', space=smem, size = 0x4, offset = 0x4, fixed_abs, tag = 'smem constant byte address 0x4 - core index']
  #allocation1 [shape = 'u32[144,128]{1,0:T(1,128)}', space=vmem, size = 0x12000, scoped, tag = 'internal scratch']
  #allocation2 [shape = 'f32[4,32]{1,0:T(4,128)}', space=vmem, size = 0x800, scoped, tag = 'scratch operand']
  %s0 = inlined_call_operand.vmem [shape: f32[2,4,256], index: 0, kind: input, shape index: {}]
  %s1 = inlined_call_operand.vmem [shape: f32[256,32], index: 1, kind: input, shape index: {}]
  %s2 = inlined_call_operand.vmem [shape: f32[2,4,32], index: 2, kind: output, shape index: {}]
  %s3 = sld [smem:[#allocation0]]
  $region49: #{ca_forward.3} parent=0
    _
  %s5 = ssub.s32 1, %s3
  %s6 = scalar_select 0, %s5, %s3
  loop: start=0, step=1, limit=4
  $region2: #{ca_forward.3} parent=0 // loop_pre_header
    _
  $region3: #{ca_forward.3} parent=0 // loop_header
    %s8 = sphi 0, %s12
    %p9 = scmp.ge.s32.totalorder %s8, 4
    %s15 = sphi 0, %s34
    %s16 = sphi 0, %s30
    %s17 = sphi 0, %s26
    %s18 = sphi 0, %s15
    %s19 = sphi 0, %s16
    %s20 = sphi 0, %s17
    %s21 = sphi 0, %s18
    %s22 = sphi 0, %s19
    %s23 = sphi 0, %s20
    %s41 = sphi 0, %s43
    %s44 = sphi 0, %s41
    %s45 = sphi 0, %s44
    %s61 = sphi 0, %s45
    %s67 = sphi 0, %s69
    %s70 = sphi 0, %s67
    %s71 = sphi 0, %s70
    %s87 = sphi 0, %s71
    %s95 = sphi 0, %s97
    %s98 = sphi 0, %s95
    %s99 = sphi 0, %s98
    %s115 = sphi 0, %s99
  $region4: #{ca_forward.3} parent=0 // loop_header_branch
    %11 = sbr.rel (%p9) target = $region8
  $region5: #{ca_forward.3} parent=0 // loop_body
    %s13 = ssub.s32 %s8, 1
    %s14 = ssub.s32 %s8, 2
    %s24 = sadd.s32 1, %s17
    %p25 = scmp.ge.s32.totalorder %s24, 1
    %s26 = scalar_select %p25, 0, %s24
    %s27 = sadd.s32 1, %s16
    %s28 = scalar_select %p25, %s27, %s16
    %p29 = scmp.ge.s32.totalorder %s28, 1
    %s30 = scalar_select %p29, 0, %s28
    %s31 = sadd.s32 1, %s15
    %s32 = scalar_select %p29, %s31, %s15
    %p33 = scmp.ge.s32.totalorder %s32, 2
    %s34 = scalar_select %p33, 0, %s32
    %s35 = ssub.s32 %s15, %s34
    %s36 = ssub.s32 %s16, %s30
    %s37 = sor.u32 %s35, %s36
    %s38 = ssub.s32 %s17, %s26
    %s39 = sor.u32 %s37, %s38
    %p40 = scmp.eq.s32.totalorder %s39, 0
    %s42 = sadd.s32 %s41, 1
    %s43 = scalar_select %p40, %s41, %s42
    %p46 = pneg %p40
    %p47 = scmp.eq.s32.totalorder %s8, 1
    %p48 = por %p46, %p47
    %p49 = scmp.ne.s32.totalorder %s41, %s44
    %p50 = scmp.eq.s32.totalorder %s8, 0
    %p51 = por %p49, %p50
    %p52 = scmp.ne.s32.totalorder %s41, %s44
    %p53 = scmp.eq.s32.totalorder %s13, 1
    %p54 = por %p52, %p53
    %p55 = scmp.ne.s32.totalorder %s44, %s45
    %p56 = scmp.eq.s32.totalorder %s13, 0
    %p57 = por %p55, %p56
    %p58 = scmp.ne.s32.totalorder %s44, %s45
    %p59 = scmp.eq.s32.totalorder %s14, 1
    %p60 = por %p58, %p59
    %p62 = scmp.ne.s32.totalorder %s45, %s61
    %p63 = scmp.eq.s32.totalorder %s14, 0
    %p64 = por %p62, %p63
    %s65 = ssub.s32 %s17, %s26
    %p66 = scmp.eq.s32.totalorder %s65, 0
    %s68 = sadd.s32 %s67, 1
    %s69 = scalar_select %p66, %s67, %s68
    %p72 = pneg %p66
    %p73 = scmp.eq.s32.totalorder %s8, 1
    %p74 = por %p72, %p73
    %p75 = scmp.ne.s32.totalorder %s67, %s70
    %p76 = scmp.eq.s32.totalorder %s8, 0
    %p77 = por %p75, %p76
    %p78 = scmp.ne.s32.totalorder %s67, %s70
    %p79 = scmp.eq.s32.totalorder %s13, 1
    %p80 = por %p78, %p79
    %p81 = scmp.ne.s32.totalorder %s70, %s71
    %p82 = scmp.eq.s32.totalorder %s13, 0
    %p83 = por %p81, %p82
    %p84 = scmp.ne.s32.totalorder %s70, %s71
    %p85 = scmp.eq.s32.totalorder %s14, 1
    %p86 = por %p84, %p85
    %p88 = scmp.ne.s32.totalorder %s71, %s87
    %p89 = scmp.eq.s32.totalorder %s14, 0
    %p90 = por %p88, %p89
    %s91 = ssub.s32 %s15, %s34
    %s92 = ssub.s32 %s16, %s30
    %s93 = sor.u32 %s91, %s92
    %p94 = scmp.eq.s32.totalorder %s93, 0
    %s96 = sadd.s32 %s95, 1
    %s97 = scalar_select %p94, %s95, %s96
    %p100 = pneg %p94
    %p101 = scmp.eq.s32.totalorder %s8, 1
    %p102 = por %p100, %p101
    %p103 = scmp.ne.s32.totalorder %s95, %s98
    %p104 = scmp.eq.s32.totalorder %s8, 0
    %p105 = por %p103, %p104
    %p106 = scmp.ne.s32.totalorder %s95, %s98
    %p107 = scmp.eq.s32.totalorder %s13, 1
    %p108 = por %p106, %p107
    %p109 = scmp.ne.s32.totalorder %s98, %s99
    %p110 = scmp.eq.s32.totalorder %s13, 0
    %p111 = por %p109, %p110
    %p112 = scmp.ne.s32.totalorder %s98, %s99
    %p113 = scmp.eq.s32.totalorder %s14, 1
    %p114 = por %p112, %p113
    %p116 = scmp.ne.s32.totalorder %s99, %s115
    %p117 = scmp.eq.s32.totalorder %s14, 0
    %p118 = por %p116, %p117
    %p119 = scmp.le.s32.totalorder 1, %s8
    %p120 = scmp.lt.s32.totalorder %s8, 3
    %p121 = pnand %p119, %p120
    %p122 = pneg %p121
    // Predicated region
    $region9: #{ca_forward.3} parent=5 // pred_check
      _
    $region10: #{ca_forward.3} parent=5 // pred_check_branch
      %124 = sbr.rel (%p121) target = $region12
    $region11: #{ca_forward.3} parent=5 // pred_region
      %s125 = ssub.s32 %s8, 1
      // Predicated region
      $region13: #{ca_forward.3} parent=11 // pred_check
        %p126 = pneg %p83
      $region14: #{ca_forward.3} parent=11 // pred_check_branch
        %128 = sbr.rel (%p126) target = $region16
      $region15: #{ca_forward.3} parent=11 // pred_region
        %s129 = smul.u32 32, %s20
        %p130 = scmp.lt.s32.totalorder %s129, 31
        %s131 = scalar_select %p130, %s129, 31
        %s132 = smul.addr %s131, 8
        %s133 = scalar_lea.vmem %s1, %s132
        %s134 = smul.u32 32, %s20
      $region16: #{ca_forward.3} parent=11 // pred_fallthru
        _
    $region12: #{ca_forward.3} parent=5 // pred_fallthru
      _
    %p135 = scmp.lt.s32.totalorder %s8, 2
    // Predicated region
    $region17: #{ca_forward.3} parent=5 // pred_check
      %p136 = pneg %p135
    $region18: #{ca_forward.3} parent=5 // pred_check_branch
      %138 = sbr.rel (%p136) target = $region20
    $region19: #{ca_forward.3} parent=5 // pred_region
      // Predicated region
      $region21: #{ca_forward.3} parent=19 // pred_check
        %p139 = pneg %p51
      $region22: #{ca_forward.3} parent=19 // pred_check_branch
        %141 = sbr.rel (%p139) target = $region24
      $region23: #{ca_forward.3} parent=19 // pred_region
        %s142 = smul.u32 2, %s17
        %p143 = scmp.lt.s32.totalorder %s15, 1
        %s144 = scalar_select %p143, %s15, 1
        %p145 = scmp.lt.s32.totalorder %s16, 0
        %s146 = scalar_select %p145, %s16, 0
        %p147 = scmp.lt.s32.totalorder %s142, 1
        %s148 = scalar_select %p147, %s142, 1
        %s149 = smul.addr %s146, 2
        %s150 = sadd.s32 %s148, %s149
        %s151 = smul.addr %s144, 2
        %s152 = sadd.s32 %s150, %s151
        %s153 = smul.addr %s152, 4
        %s154 = scalar_lea.vmem %s0, %s153
        %s155 = smul.u32 2, %s17
      $region24: #{ca_forward.3} parent=19 // pred_fallthru
        _
    $region20: #{ca_forward.3} parent=5 // pred_fallthru
      _
    %p156 = scmp.le.s32.totalorder 1, %s8
    %p157 = scmp.lt.s32.totalorder %s8, 3
    %p158 = pnand %p156, %p157
    %p159 = pneg %p158
    // Predicated region
    $region25: #{ca_forward.3} parent=5 // pred_check
      _
    $region26: #{ca_forward.3} parent=5 // pred_check_branch
      %161 = sbr.rel (%p158) target = $region28
    $region27: #{ca_forward.3} parent=5 // pred_region
      %s162 = ssub.s32 %s8, 1
      %s163 = smul.u32 2, %s20
      %p164 = scmp.lt.s32.totalorder %s18, 1
      %s165 = scalar_select %p164, %s18, 1
      %p166 = scmp.lt.s32.totalorder %s19, 0
      %s167 = scalar_select %p166, %s19, 0
      %p168 = scmp.lt.s32.totalorder %s163, 1
      %s169 = scalar_select %p168, %s163, 1
      %s170 = smul.addr %s167, 2
      %s171 = sadd.s32 %s169, %s170
      %s172 = smul.addr %s165, 2
      %s173 = sadd.s32 %s171, %s172
      %s174 = smul.addr %s173, 4
      %s175 = scalar_lea.vmem %s0, %s174
      %p176 = pneg %p57
      %p177 = pneg %p54
      %s178 = smul.u32 32, %s20
      %p179 = scmp.lt.s32.totalorder %s178, 31
      %s180 = scalar_select %p179, %s178, 31
      %s181 = smul.addr %s180, 8
      %s182 = scalar_lea.vmem %s1, %s181
      %p183 = pneg %p83
      %p184 = pneg %p80
      %p185 = pneg %p111
      %p186 = pneg %p108
      %p187 = scmp.lt.s32.totalorder %s18, 1
      %s188 = scalar_select %p187, %s18, 1
      %p189 = scmp.lt.s32.totalorder %s19, 0
      %s190 = scalar_select %p189, %s19, 0
      %s191 = sadd.s32 %s190, %s188
      %s192 = smul.addr %s191, 4
      %s193 = scalar_lea.vmem %s2, %s192
      %s194 = smul.u32 2, %s20
      %p195 = scmp.lt.s32.totalorder %s18, 1
      %s196 = scalar_select %p195, %s18, 1
      %p197 = scmp.lt.s32.totalorder %s19, 0
      %s198 = scalar_select %p197, %s19, 0
      %p199 = scmp.lt.s32.totalorder %s194, 1
      %s200 = scalar_select %p199, %s194, 1
      %s201 = smul.addr %s198, 2
      %s202 = sadd.s32 %s200, %s201
      %s203 = smul.addr %s196, 2
      %s204 = sadd.s32 %s202, %s203
      %s205 = smul.addr %s204, 4
      %s206 = scalar_lea.vmem %s0, %s205
      %s207 = smul.u32 2, %s20
      %s208 = smul.u32 32, %s20
      %p209 = scmp.lt.s32.totalorder %s208, 31
      %s210 = scalar_select %p209, %s208, 31
      %s211 = smul.addr %s210, 8
      %s212 = scalar_lea.vmem %s1, %s211
      %s213 = smul.u32 32, %s20
      %p214 = scmp.lt.s32.totalorder %s18, 1
      %s215 = scalar_select %p214, %s18, 1
      %p216 = scmp.lt.s32.totalorder %s19, 0
      %s217 = scalar_select %p216, %s19, 0
      %s218 = sadd.s32 %s217, %s215
      %s219 = smul.addr %s218, 4
      %s220 = scalar_lea.vmem %s2, %s219
      %p221 = scmp.eq.s32.totalorder %s20, 0
      // Predicated region
      $region29: #{ca_forward.3} parent=27 // pred_check
        %p222 = pneg %p221
      $region30: #{ca_forward.3} parent=27 // pred_check_branch
        %224 = sbr.rel (%p222) target = $region32
      $region31: #{ca_forward.3} parent=27 // pred_region
        %vm225 = vcmask 257024
        %226 = vst.msk [vmem:[#allocation2] sm:$0xf] %vm225, 0.0
      $region32: #{ca_forward.3} parent=27 // pred_fallthru
        _
      %v227 = vld [vmem:[#allocation2] sm:$0xf]
      %v228 = vld [vmem:[%s206] sm:$0xff]
      %v229 = vld [vmem:[%s212] sm:$0xff]
      %v230 = vld [vmem:[%s212 + $0x8] sm:$0xff]
      %v231 = vld [vmem:[%s212 + $0x10] sm:$0xff]
      %v232 = vld [vmem:[%s212 + $0x18] sm:$0xff]
      %v233 = vld [vmem:[%s212 + $0x20] sm:$0xff]
      %v234 = vld [vmem:[%s212 + $0x28] sm:$0xff]
      %v235 = vld [vmem:[%s212 + $0x30] sm:$0xff]
      %v236 = vld [vmem:[%s212 + $0x38] sm:$0xff]
      %v237 = vld [vmem:[%s212 + $0x40] sm:$0xff]
      %v238 = vld [vmem:[%s212 + $0x48] sm:$0xff]
      %v239 = vld [vmem:[%s212 + $0x50] sm:$0xff]
      %v240 = vld [vmem:[%s212 + $0x58] sm:$0xff]
      %v241 = vld [vmem:[%s212 + $0x60] sm:$0xff]
      %v242 = vld [vmem:[%s212 + $0x68] sm:$0xff]
      %v243 = vld [vmem:[%s212 + $0x70] sm:$0xff]
      %v244 = vld [vmem:[%s212 + $0x78] sm:$0xff]
      %v245 = vld [vmem:[%s212 + $0x80] sm:$0xff]
      %v246 = vld [vmem:[%s212 + $0x88] sm:$0xff]
      %v247 = vld [vmem:[%s212 + $0x90] sm:$0xff]
      %v248 = vld [vmem:[%s212 + $0x98] sm:$0xff]
      %v249 = vld [vmem:[%s212 + $0xa0] sm:$0xff]
      %v250 = vld [vmem:[%s212 + $0xa8] sm:$0xff]
      %v251 = vld [vmem:[%s212 + $0xb0] sm:$0xff]
      %v252 = vld [vmem:[%s212 + $0xb8] sm:$0xff]
      %v253 = vld [vmem:[%s212 + $0xc0] sm:$0xff]
      %v254 = vld [vmem:[%s212 + $0xc8] sm:$0xff]
      %v255 = vld [vmem:[%s212 + $0xd0] sm:$0xff]
      %v256 = vld [vmem:[%s212 + $0xd8] sm:$0xff]
      %v257 = vld [vmem:[%s212 + $0xe0] sm:$0xff]
      %v258 = vld [vmem:[%s212 + $0xe8] sm:$0xff]
      %v259 = vld [vmem:[%s212 + $0xf0] sm:$0xff]
      %v260 = vld [vmem:[%s212 + $0xf8] sm:$0xff]
      %v262 = vcombine.high %v228, %v228
      %264 = vmatprep.subr.mxu0 0.0
      %265 = vmatpush1.msra.mxu0 %v244
      %266 = vmatprep.subr.mxu0 0.0
      %267 = vmatpush1.msra.mxu0 %v243
      %268 = vmatprep.subr.mxu0 0.0
      %269 = vmatpush1.msra.mxu0 %v242
      %270 = vmatprep.subr.mxu0 0.0
      %271 = vmatpush1.msra.mxu0 %v241
      %272 = vmatprep.subr.mxu0 0.0
      %273 = vmatpush1.msra.mxu0 %v240
      %274 = vmatprep.subr.mxu0 0.0
      %275 = vmatpush1.msra.mxu0 %v239
      %276 = vmatprep.subr.mxu0 0.0
      %277 = vmatpush1.msra.mxu0 %v238
      %278 = vmatprep.subr.mxu0 0.0
      %279 = vmatpush1.msra.mxu0 %v237
      %280 = vmatprep.subr.mxu0 0.0
      %281 = vmatpush1.msra.mxu0 %v236
      %282 = vmatprep.subr.mxu0 0.0
      %283 = vmatpush1.msra.mxu0 %v235
      %284 = vmatprep.subr.mxu0 0.0
      %285 = vmatpush1.msra.mxu0 %v234
      %286 = vmatprep.subr.mxu0 0.0
      %287 = vmatpush1.msra.mxu0 %v233
      %288 = vmatprep.subr.mxu0 0.0
      %289 = vmatpush1.msra.mxu0 %v232
      %290 = vmatprep.subr.mxu0 0.0
      %291 = vmatpush1.msra.mxu0 %v231
      %292 = vmatprep.subr.mxu0 0.0
      %293 = vmatpush1.msra.mxu0 %v230
      %294 = vmatprep.subr.mxu0 0.0
      %295 = vmatpush1.msra.mxu0 %v229
      %296 = vmatprep.subr.mxu0 0.0
      %297 = vmatpush2.msra.mxu0 %v260
      %298 = vmatprep.subr.mxu0 0.0
      %299 = vmatpush2.msra.mxu0 %v259
      %300 = vmatprep.subr.mxu0 0.0
      %301 = vmatpush2.msra.mxu0 %v258
      %302 = vmatprep.subr.mxu0 0.0
      %303 = vmatpush2.msra.mxu0 %v257
      %304 = vmatprep.subr.mxu0 0.0
      %305 = vmatpush2.msra.mxu0 %v256
      %306 = vmatprep.subr.mxu0 0.0
      %307 = vmatpush2.msra.mxu0 %v255
      %308 = vmatprep.subr.mxu0 0.0
      %309 = vmatpush2.msra.mxu0 %v254
      %310 = vmatprep.subr.mxu0 0.0
      %311 = vmatpush2.msra.mxu0 %v253
      %312 = vmatprep.subr.mxu0 0.0
      %313 = vmatpush2.msra.mxu0 %v252
      %314 = vmatprep.subr.mxu0 0.0
      %315 = vmatpush2.msra.mxu0 %v251
      %316 = vmatprep.subr.mxu0 0.0
      %317 = vmatpush2.msra.mxu0 %v250
      %318 = vmatprep.subr.mxu0 0.0
      %319 = vmatpush2.msra.mxu0 %v249
      %320 = vmatprep.subr.mxu0 0.0
      %321 = vmatpush2.msra.mxu0 %v248
      %322 = vmatprep.subr.mxu0 0.0
      %323 = vmatpush2.msra.mxu0 %v247
      %324 = vmatprep.subr.mxu0 0.0
      %325 = vmatpush2.msra.mxu0 %v246
      %326 = vmatprep.subr.mxu0 0.0
      %327 = vmatpush2.msra.mxu0 %v245
      %328 = vmatprep.mubr.f32.mxu0 %v262
      %329 = vmatmul.mubr.f32.gmra.mxu0 %v228
      %v330 = vpop.f32.mrf.mxu0
      %v331 = vadd.f32 0.0, %v330
      %v332 = vpop.f32.mrf.mxu0
      %333 = vdwg.mxu0
      %v334 = vadd.f32 %v227, %v331
      %vm335 = vcmask 257024
      %336 = vst.msk [vmem:[#allocation2] sm:$0xf] %vm335, %v334
      // Predicated region
      $region33: #{ca_forward.3} parent=27 // pred_check
        %p337 = pneg %p221
      $region34: #{ca_forward.3} parent=27 // pred_check_branch
        %339 = sbr.rel (%p337) target = $region36
      $region35: #{ca_forward.3} parent=27 // pred_region
        %v340 = vld [vmem:[#allocation2] sm:$0xf]
        %341 = vst.msk [vmem:[%s220] sm:$0xf] %vm335, %v340
      $region36: #{ca_forward.3} parent=27 // pred_fallthru
        _
      %p342 = scmp.lt.s32.totalorder %s18, 1
      %s343 = scalar_select %p342, %s18, 1
      %p344 = scmp.lt.s32.totalorder %s19, 0
      %s345 = scalar_select %p344, %s19, 0
      %s346 = sadd.s32 %s345, %s343
      %s347 = smul.addr %s346, 4
      %s348 = scalar_lea.vmem %s2, %s347
      // Predicated region
      $region37: #{ca_forward.3} parent=27 // pred_check
        %p349 = pneg %p108
      $region38: #{ca_forward.3} parent=27 // pred_check_branch
        %351 = sbr.rel (%p349) target = $region40
      $region39: #{ca_forward.3} parent=27 // pred_region
        _
      $region40: #{ca_forward.3} parent=27 // pred_fallthru
        _
    $region28: #{ca_forward.3} parent=5 // pred_fallthru
      _
    %p352 = scmp.le.s32.totalorder 2, %s8
    // Predicated region
    $region41: #{ca_forward.3} parent=5 // pred_check
      %p353 = pneg %p352
    $region42: #{ca_forward.3} parent=5 // pred_check_branch
      %355 = sbr.rel (%p353) target = $region44
    $region43: #{ca_forward.3} parent=5 // pred_region
      %s356 = ssub.s32 %s8, 2
      // Predicated region
      $region45: #{ca_forward.3} parent=43 // pred_check
        %p357 = pneg %p114
      $region46: #{ca_forward.3} parent=43 // pred_check_branch
        %359 = sbr.rel (%p357) target = $region48
      $region47: #{ca_forward.3} parent=43 // pred_region
        %p360 = scmp.lt.s32.totalorder %s21, 1
        %s361 = scalar_select %p360, %s21, 1
        %p362 = scmp.lt.s32.totalorder %s22, 0
        %s363 = scalar_select %p362, %s22, 0
        %s364 = sadd.s32 %s363, %s361
        %s365 = smul.addr %s364, 4
        %s366 = scalar_lea.vmem %s2, %s365
      $region48: #{ca_forward.3} parent=43 // pred_fallthru
        _
    $region44: #{ca_forward.3} parent=5 // pred_fallthru
      _
  $region6: #{ca_forward.3} parent=0 // loop_footer
    %s12 = sadd.s32 1, %s8
  $region7: #{ca_forward.3} parent=0 // loop_footer_branch
    %7 = sbr.rel target = $region3
  $region8: #{ca_forward.3} parent=0 // loop_exit
    _

</llo_original>
